<compile_context>
chip_gen: v5e
topology: v5e:2x2
jax: 0.10.0
libtpu: 0.0.40
codegen_flags: <defaults>
</compile_context>

<pallas_src>
import functools

import jax
import jax.numpy as jnp
from jax import lax
from jax.experimental import pallas as pl
from jax.experimental.pallas import tpu as pltpu

NEG_SLOPE = 0.1   # nn.LeakyReLU(0.1)
BN_EPS = 1e-5     # nn.BatchNorm2d default eps


def _leaky_relu(v):
    return jnp.where(v > 0, v, v * NEG_SLOPE)


def _lane_shift(x, off):
    """Circular lane shift: S[:, q] = x[:, (q + off) % L].

    Wrapped lanes are garbage but are always zeroed by the halo mask."""
    L = x.shape[-1]
    o = off % L
    if o == 0:
        return x
    return jnp.concatenate([x[:, o:], x[:, :o]], axis=-1)


def _conv3x3(x_bf, w_ref, mask, W_img):
    """3x3 / pad-1 conv as 9 accumulated bf16 matmuls.

    x_bf : (C, H*W) bf16   one image, channels on sublanes, spatial on lanes
    w_ref: (9, Cout, C)    bf16 folded weights, tap-major
    mask : (9, H*W)  bf16  {0,1}; mask[t] zeroes lanes whose tap-t read falls
                           in the 1-pixel zero-padding halo
    returns (Cout, H*W) f32
    """
    Cout = w_ref.shape[1]
    HW = x_bf.shape[-1]
    acc = jnp.zeros((Cout, HW), jnp.float32)
    t = 0
    for dy in range(3):
        for dx in range(3):
            off = (dy - 1) * W_img + (dx - 1)
            s = _lane_shift(x_bf, off)
            if off != 0:                       # centre tap mask is all-ones
                s = s * mask[t:t + 1, :]
            acc = acc + jnp.dot(w_ref[t], s,
                                preferred_element_type=jnp.float32)
            t += 1
    return acc


def _resblock_kernel(x_ref, mask_ref, w1_ref, b1_ref, w2_ref, b2_ref, *rest,
                     W, identity):
    """One block of Bn images per grid step.

    x_ref : (Bn, Cin, H*W) f32      NCHW input, spatial flattened on lanes
    mask_ref: (9, H*W) bf16         halo masks (shared by both convs)
    w1_ref: (9, Cout, Cin) bf16     conv1 weights (BN folded), tap-major
    b1_ref: (Cout, 1) f32           conv1 bias (BN folded)
    w2_ref: (9, Cout, Cout) bf16
    b2_ref: (Cout, 1) f32
    [wr_ref: (Cout, Cin) bf16, br_ref: (Cout, 1) f32]   only if not identity
    o_ref : (Bn, Cout, H*W) f32
    """
    if identity:
        (o_ref,) = rest
        wr_ref = br_ref = None
    else:
        wr_ref, br_ref, o_ref = rest

    Bn = x_ref.shape[0]
    mask = mask_ref[...]                                   # (9, HW) bf16

    for b in range(Bn):
        x_img = x_ref[b]                                   # (Cin, HW) f32
        x_bf = x_img.astype(jnp.bfloat16)

        # ---- conv1 (3x3, pad 1) + folded BN + LeakyReLU(0.1) ----
        acc1 = _conv3x3(x_bf, w1_ref, mask, W)
        h1 = _leaky_relu(acc1 + b1_ref[...])               # (Cout, HW) f32

        # ---- conv2 (3x3, pad 1) + folded BN (no activation) ----
        acc2 = _conv3x3(h1.astype(jnp.bfloat16), w2_ref, mask, W)
        h2 = acc2 + b2_ref[...]

        # ---- residual branch ----
        if identity:
            res = x_img                                    # exact f32 skip
        else:
            res = jnp.dot(wr_ref[...], x_bf,
                          preferred_element_type=jnp.float32) + br_ref[...]

        o_ref[b] = _leaky_relu(h2 + res).astype(o_ref.dtype)


# ---------------- parameter glue (plain JAX) ----------------

def _fold_bn(w_oihw, b_o, bn):
    """Fold eval-mode BatchNorm into the preceding conv (keeps OIHW)."""
    gamma, beta, mean, var = bn
    scale = gamma / jnp.sqrt(var + BN_EPS)
    w_eff = w_oihw * scale[:, None, None, None]
    b_eff = (b_o - mean) * scale + beta
    return w_eff, b_eff


def _folded_params(params, Cin):
    w1, b1 = _fold_bn(params['conv1_w'], params['conv1_b'], params['bn1'])
    w2, b2 = _fold_bn(params['conv2_w'], params['conv2_b'], params['bn2'])
    Cout = w1.shape[0]
    identity = (Cin == Cout)
    if identity:
        wr, br = None, None
    else:
        wr4, br = _fold_bn(params['convr_w'], params['convr_b'], params['bnr'])
        wr = wr4[:, :, 0, 0]                               # (Cout, Cin)
    return w1, b1, w2, b2, wr, br, identity


def _tap_major(w_oihw):
    """(O, I, 3, 3) OIHW -> (9, O, I), tap index t = dy*3 + dx."""
    O, I = w_oihw.shape[0], w_oihw.shape[1]
    return jnp.transpose(w_oihw, (2, 3, 0, 1)).reshape(9, O, I)


def _halo_masks(H, W):
    """(9, H*W) {0,1} masks: mask[t, p] = 1 iff tap t at output pixel p reads a
    real input pixel (not the zero-padding halo)."""
    p = jnp.arange(H * W)
    ys, xs = p // W, p % W
    rows = []
    for dy in range(3):
        for dx in range(3):
            ok = ((ys + dy - 1 >= 0) & (ys + dy - 1 < H) &
                  (xs + dx - 1 >= 0) & (xs + dx - 1 < W))
            rows.append(ok)
    return jnp.stack(rows).astype(jnp.bfloat16)


def residual_block_forward(x_nchw, params):
    N, Cin, H, W = x_nchw.shape
    w1, b1, w2, b2, wr, br, identity = _folded_params(params, Cin)
    Cout = w1.shape[0]
    HW = H * W

    # Batch blocking: several images per step, but keep grid extent >= 2 so
    # both v7x TensorCores get work (v5e/v6e are single-TC, this is harmless).
    Bn = max(1, min(8, N // 2))
    Npad = ((N + Bn - 1) // Bn) * Bn

    xf = x_nchw.reshape(N, Cin, HW)            # NCHW -> (N, C, H*W): free
    if Npad != N:
        xf = jnp.pad(xf, ((0, Npad - N), (0, 0), (0, 0)))

    mask = _halo_masks(H, W)
    w1f = _tap_major(w1).astype(jnp.bfloat16)              # (9, Cout, Cin)
    w2f = _tap_major(w2).astype(jnp.bfloat16)              # (9, Cout, Cout)
    b1c = b1.reshape(Cout, 1).astype(jnp.float32)
    b2c = b2.reshape(Cout, 1).astype(jnp.float32)

    inputs = [xf, mask, w1f, b1c, w2f, b2c]
    in_specs = [
        pl.BlockSpec((Bn, Cin, HW), lambda n: (n, 0, 0)),
        pl.BlockSpec((9, HW), lambda n: (0, 0)),
        pl.BlockSpec((9, Cout, Cin), lambda n: (0, 0, 0)),
        pl.BlockSpec((Cout, 1), lambda n: (0, 0)),
        pl.BlockSpec((9, Cout, Cout), lambda n: (0, 0, 0)),
        pl.BlockSpec((Cout, 1), lambda n: (0, 0)),
    ]
    if not identity:
        inputs += [wr.astype(jnp.bfloat16),
                   br.reshape(Cout, 1).astype(jnp.float32)]
        in_specs += [
            pl.BlockSpec((Cout, Cin), lambda n: (0, 0)),
            pl.BlockSpec((Cout, 1), lambda n: (0, 0)),
        ]

    kernel = functools.partial(_resblock_kernel, W=W, identity=identity)
    out = pl.pallas_call(
        kernel,
        out_shape=jax.ShapeDtypeStruct((Npad, Cout, HW), jnp.float32),
        grid_spec=pltpu.PrefetchScalarGridSpec(
            num_scalar_prefetch=0,
            grid=(Npad // Bn,),
            in_specs=in_specs,
            out_specs=pl.BlockSpec((Bn, Cout, HW), lambda n: (n, 0, 0)),
        ),
        compiler_params=pltpu.CompilerParams(
            dimension_semantics=("parallel",)),
    )(*inputs)

    return out[:N].reshape(N, Cout, H, W)      # already NCHW: free reshape


# ---------------- pure-JAX reference (for verification) ----------------

def residual_block_reference(x_nchw, params):
    _, Cin, _, _ = x_nchw.shape
    w1, b1, w2, b2, wr, br, identity = _folded_params(params, Cin)

    def conv3(inp, w, b):
        y = lax.conv_general_dilated(
            inp, w, (1, 1), ((1, 1), (1, 1)),
            dimension_numbers=('NCHW', 'OIHW', 'NCHW'),
            precision=lax.Precision.HIGHEST)
        return y + b[None, :, None, None]

    h1 = _leaky_relu(conv3(x_nchw, w1, b1))
    h2 = conv3(h1, w2, b2)
    if identity:
        res = x_nchw
    else:
        res = jnp.einsum('oc,nchw->nohw', wr, x_nchw,
                         precision=lax.Precision.HIGHEST) \
            + br[None, :, None, None]
    return _leaky_relu(h2 + res)


if __name__ == "__main__":
    import numpy as np

    key = jax.random.PRNGKey(0)

    def conv_init(kw_, kb_, co, ci, ksz):
        bound = 1.0 / float(ci * ksz * ksz) ** 0.5
        w = jax.random.uniform(kw_, (co, ci, ksz, ksz), jnp.float32, -bound, bound)
        b = jax.random.uniform(kb_, (co,), jnp.float32, -bound, bound)
        return w, b

    def bn_init(k, c):
        k1, k2, k3, k4 = jax.random.split(k, 4)
        gamma = jax.random.uniform(k1, (c,), jnp.float32, 0.5, 1.5)
        beta = 0.1 * jax.random.normal(k2, (c,), jnp.float32)
        mean = 0.1 * jax.random.normal(k3, (c,), jnp.float32)
        var = jax.random.uniform(k4, (c,), jnp.float32, 0.5, 1.5)
        return gamma, beta, mean, var

    def make_params(k, ci, co):
        ks = jax.random.split(k, 9)
        c1w, c1b = conv_init(ks[0], ks[1], co, ci, 3)
        c2w, c2b = conv_init(ks[2], ks[3], co, co, 3)
        crw, crb = conv_init(ks[4], ks[5], co, ci, 1)
        return {
            'conv1_w': c1w, 'conv1_b': c1b, 'bn1': bn_init(ks[6], co),
            'conv2_w': c2w, 'conv2_b': c2b, 'bn2': bn_init(ks[7], co),
            'convr_w': crw, 'convr_b': crb, 'bnr': bn_init(ks[8], co),
        }

    cases = [
        # (N, Cin, Cout, H, W)
        (2, 4, 8, 16, 16),    # 1x1-conv residual branch, Bn=1, grid=2
        (5, 8, 8, 16, 16),    # identity residual, Bn=2, batch padded to 6
    ]
    keys = jax.random.split(key, 2 * len(cases))
    for idx, (N, Cin, Cout, H, W) in enumerate(cases):
        params = make_params(keys[2 * idx], Cin, Cout)
        x = jax.random.normal(keys[2 * idx + 1], (N, Cin, H, W), jnp.float32)

        out = jax.block_until_ready(residual_block_forward(x, params))
        assert out.shape == (N, Cout, H, W)

        ref = residual_block_reference(x, params)
        # bf16 MXU operands (f32 accumulation) vs an f32 HIGHEST reference.
        np.testing.assert_allclose(np.asarray(out), np.asarray(ref),
                                   rtol=5e-2, atol=5e-2)

    print("KERNEL_OK")
</pallas_src>

<mosaic_0001>
module attributes {stable_mosaic.version = 11 : i64} {
  func.func @_resblock_kernel(%arg0: i32, %arg1: memref<1x4x256xf32, #tpu.memory_space<vmem>>, %arg2: memref<9x256xbf16, #tpu.memory_space<vmem>>, %arg3: memref<9x8x4xbf16, #tpu.memory_space<vmem>>, %arg4: memref<8x1xf32, #tpu.memory_space<vmem>>, %arg5: memref<9x8x8xbf16, #tpu.memory_space<vmem>>, %arg6: memref<8x1xf32, #tpu.memory_space<vmem>>, %arg7: memref<8x4xbf16, #tpu.memory_space<vmem>>, %arg8: memref<8x1xf32, #tpu.memory_space<vmem>>, %arg9: memref<1x8x256xf32, #tpu.memory_space<vmem>>) attributes {dimension_semantics = [#tpu.dimension_semantics<parallel>], iteration_bounds = array<i64: 2>, scalar_prefetch = 0 : i64, scratch_operands = 0 : i64, tpu.core_type = #tpu.core_type<tc>, window_params = [{transform_indices = @transform_0, window_bounds = array<i64: 1, 4, 256>}, {pipeline_mode = #tpu.pipeline_mode<synchronous>, transform_indices = @transform_1, window_bounds = array<i64: 9, 256>}, {pipeline_mode = #tpu.pipeline_mode<synchronous>, transform_indices = @transform_2, window_bounds = array<i64: 9, 8, 4>}, {pipeline_mode = #tpu.pipeline_mode<synchronous>, transform_indices = @transform_3, window_bounds = array<i64: 8, 1>}, {pipeline_mode = #tpu.pipeline_mode<synchronous>, transform_indices = @transform_4, window_bounds = array<i64: 9, 8, 8>}, {pipeline_mode = #tpu.pipeline_mode<synchronous>, transform_indices = @transform_5, window_bounds = array<i64: 8, 1>}, {pipeline_mode = #tpu.pipeline_mode<synchronous>, transform_indices = @transform_6, window_bounds = array<i64: 8, 4>}, {pipeline_mode = #tpu.pipeline_mode<synchronous>, transform_indices = @transform_7, window_bounds = array<i64: 8, 1>}, {transform_indices = @transform_8, window_bounds = array<i64: 1, 8, 256>}]} {
    %c0 = arith.constant 0 : index
    %c0_0 = arith.constant 0 : index
    %0 = vector.load %arg2[%c0, %c0_0] : memref<9x256xbf16, #tpu.memory_space<vmem>>, vector<9x256xbf16>
    %c0_1 = arith.constant 0 : index
    %c0_2 = arith.constant 0 : index
    %c0_3 = arith.constant 0 : index
    %1 = vector.load %arg1[%c0_1, %c0_2, %c0_3] : memref<1x4x256xf32, #tpu.memory_space<vmem>>, vector<1x4x256xf32>
    %2 = vector.shape_cast %1 : vector<1x4x256xf32> to vector<4x256xf32>
    %3 = arith.truncf %2 : vector<4x256xf32> to vector<4x256xbf16>
    %cst = arith.constant 0.000000e+00 : f32
    %4 = vector.broadcast %cst : f32 to vector<8x256xf32>
    %5 = vector.extract_strided_slice %3 {offsets = [0, 239], sizes = [4, 17], strides = [1, 1]} : vector<4x256xbf16> to vector<4x17xbf16>
    %6 = vector.extract_strided_slice %3 {offsets = [0, 0], sizes = [4, 239], strides = [1, 1]} : vector<4x256xbf16> to vector<4x239xbf16>
    %7 = tpu.concatenate %5, %6 in 1 : vector<4x17xbf16>, vector<4x239xbf16> -> vector<4x256xbf16>
    %8 = vector.extract_strided_slice %0 {offsets = [0, 0], sizes = [1, 256], strides = [1, 1]} : vector<9x256xbf16> to vector<1x256xbf16>
    %9 = vector.broadcast %8 : vector<1x256xbf16> to vector<4x256xbf16>
    %10 = arith.mulf %7, %9 : vector<4x256xbf16>
    %c0_4 = arith.constant 0 : index
    %c0_5 = arith.constant 0 : index
    %c0_6 = arith.constant 0 : index
    %11 = vector.load %arg3[%c0_4, %c0_5, %c0_6] : memref<9x8x4xbf16, #tpu.memory_space<vmem>>, vector<1x8x4xbf16>
    %12 = vector.shape_cast %11 : vector<1x8x4xbf16> to vector<8x4xbf16>
    %cst_7 = arith.constant dense<0.000000e+00> : vector<8x256xf32>
    %13 = tpu.matmul %12, %10, %cst_7 {dimension_numbers = #tpu.dot_dimension_numbers<[1], [0], [0], [1], [0, 0, 1, 1], [], []>} : vector<8x4xbf16>, vector<4x256xbf16>, vector<8x256xf32> -> vector<8x256xf32>
    %14 = arith.addf %4, %13 : vector<8x256xf32>
    %15 = vector.extract_strided_slice %3 {offsets = [0, 240], sizes = [4, 16], strides = [1, 1]} : vector<4x256xbf16> to vector<4x16xbf16>
    %16 = vector.extract_strided_slice %3 {offsets = [0, 0], sizes = [4, 240], strides = [1, 1]} : vector<4x256xbf16> to vector<4x240xbf16>
    %17 = tpu.concatenate %15, %16 in 1 : vector<4x16xbf16>, vector<4x240xbf16> -> vector<4x256xbf16>
    %18 = vector.extract_strided_slice %0 {offsets = [1, 0], sizes = [1, 256], strides = [1, 1]} : vector<9x256xbf16> to vector<1x256xbf16>
    %19 = vector.broadcast %18 : vector<1x256xbf16> to vector<4x256xbf16>
    %20 = arith.mulf %17, %19 : vector<4x256xbf16>
    %c1 = arith.constant 1 : index
    %c0_8 = arith.constant 0 : index
    %c0_9 = arith.constant 0 : index
    %21 = vector.load %arg3[%c1, %c0_8, %c0_9] : memref<9x8x4xbf16, #tpu.memory_space<vmem>>, vector<1x8x4xbf16>
    %22 = vector.shape_cast %21 : vector<1x8x4xbf16> to vector<8x4xbf16>
    %cst_10 = arith.constant dense<0.000000e+00> : vector<8x256xf32>
    %23 = tpu.matmul %22, %20, %cst_10 {dimension_numbers = #tpu.dot_dimension_numbers<[1], [0], [0], [1], [0, 0, 1, 1], [], []>} : vector<8x4xbf16>, vector<4x256xbf16>, vector<8x256xf32> -> vector<8x256xf32>
    %24 = arith.addf %14, %23 : vector<8x256xf32>
    %25 = vector.extract_strided_slice %3 {offsets = [0, 241], sizes = [4, 15], strides = [1, 1]} : vector<4x256xbf16> to vector<4x15xbf16>
    %26 = vector.extract_strided_slice %3 {offsets = [0, 0], sizes = [4, 241], strides = [1, 1]} : vector<4x256xbf16> to vector<4x241xbf16>
    %27 = tpu.concatenate %25, %26 in 1 : vector<4x15xbf16>, vector<4x241xbf16> -> vector<4x256xbf16>
    %28 = vector.extract_strided_slice %0 {offsets = [2, 0], sizes = [1, 256], strides = [1, 1]} : vector<9x256xbf16> to vector<1x256xbf16>
    %29 = vector.broadcast %28 : vector<1x256xbf16> to vector<4x256xbf16>
    %30 = arith.mulf %27, %29 : vector<4x256xbf16>
    %c2 = arith.constant 2 : index
    %c0_11 = arith.constant 0 : index
    %c0_12 = arith.constant 0 : index
    %31 = vector.load %arg3[%c2, %c0_11, %c0_12] : memref<9x8x4xbf16, #tpu.memory_space<vmem>>, vector<1x8x4xbf16>
    %32 = vector.shape_cast %31 : vector<1x8x4xbf16> to vector<8x4xbf16>
    %cst_13 = arith.constant dense<0.000000e+00> : vector<8x256xf32>
    %33 = tpu.matmul %32, %30, %cst_13 {dimension_numbers = #tpu.dot_dimension_numbers<[1], [0], [0], [1], [0, 0, 1, 1], [], []>} : vector<8x4xbf16>, vector<4x256xbf16>, vector<8x256xf32> -> vector<8x256xf32>
    %34 = arith.addf %24, %33 : vector<8x256xf32>
    %35 = vector.extract_strided_slice %3 {offsets = [0, 255], sizes = [4, 1], strides = [1, 1]} : vector<4x256xbf16> to vector<4x1xbf16>
    %36 = vector.extract_strided_slice %3 {offsets = [0, 0], sizes = [4, 255], strides = [1, 1]} : vector<4x256xbf16> to vector<4x255xbf16>
    %37 = tpu.concatenate %35, %36 in 1 : vector<4x1xbf16>, vector<4x255xbf16> -> vector<4x256xbf16>
    %38 = vector.extract_strided_slice %0 {offsets = [3, 0], sizes = [1, 256], strides = [1, 1]} : vector<9x256xbf16> to vector<1x256xbf16>
    %39 = vector.broadcast %38 : vector<1x256xbf16> to vector<4x256xbf16>
    %40 = arith.mulf %37, %39 : vector<4x256xbf16>
    %c3 = arith.constant 3 : index
    %c0_14 = arith.constant 0 : index
    %c0_15 = arith.constant 0 : index
    %41 = vector.load %arg3[%c3, %c0_14, %c0_15] : memref<9x8x4xbf16, #tpu.memory_space<vmem>>, vector<1x8x4xbf16>
    %42 = vector.shape_cast %41 : vector<1x8x4xbf16> to vector<8x4xbf16>
    %cst_16 = arith.constant dense<0.000000e+00> : vector<8x256xf32>
    %43 = tpu.matmul %42, %40, %cst_16 {dimension_numbers = #tpu.dot_dimension_numbers<[1], [0], [0], [1], [0, 0, 1, 1], [], []>} : vector<8x4xbf16>, vector<4x256xbf16>, vector<8x256xf32> -> vector<8x256xf32>
    %44 = arith.addf %34, %43 : vector<8x256xf32>
    %c4 = arith.constant 4 : index
    %c0_17 = arith.constant 0 : index
    %c0_18 = arith.constant 0 : index
    %45 = vector.load %arg3[%c4, %c0_17, %c0_18] : memref<9x8x4xbf16, #tpu.memory_space<vmem>>, vector<1x8x4xbf16>
    %46 = vector.shape_cast %45 : vector<1x8x4xbf16> to vector<8x4xbf16>
    %cst_19 = arith.constant dense<0.000000e+00> : vector<8x256xf32>
    %47 = tpu.matmul %46, %3, %cst_19 {dimension_numbers = #tpu.dot_dimension_numbers<[1], [0], [0], [1], [0, 0, 1, 1], [], []>} : vector<8x4xbf16>, vector<4x256xbf16>, vector<8x256xf32> -> vector<8x256xf32>
    %48 = arith.addf %44, %47 : vector<8x256xf32>
    %49 = vector.extract_strided_slice %3 {offsets = [0, 1], sizes = [4, 255], strides = [1, 1]} : vector<4x256xbf16> to vector<4x255xbf16>
    %50 = vector.extract_strided_slice %3 {offsets = [0, 0], sizes = [4, 1], strides = [1, 1]} : vector<4x256xbf16> to vector<4x1xbf16>
    %51 = tpu.concatenate %49, %50 in 1 : vector<4x255xbf16>, vector<4x1xbf16> -> vector<4x256xbf16>
    %52 = vector.extract_strided_slice %0 {offsets = [5, 0], sizes = [1, 256], strides = [1, 1]} : vector<9x256xbf16> to vector<1x256xbf16>
    %53 = vector.broadcast %52 : vector<1x256xbf16> to vector<4x256xbf16>
    %54 = arith.mulf %51, %53 : vector<4x256xbf16>
    %c5 = arith.constant 5 : index
    %c0_20 = arith.constant 0 : index
    %c0_21 = arith.constant 0 : index
    %55 = vector.load %arg3[%c5, %c0_20, %c0_21] : memref<9x8x4xbf16, #tpu.memory_space<vmem>>, vector<1x8x4xbf16>
    %56 = vector.shape_cast %55 : vector<1x8x4xbf16> to vector<8x4xbf16>
    %cst_22 = arith.constant dense<0.000000e+00> : vector<8x256xf32>
    %57 = tpu.matmul %56, %54, %cst_22 {dimension_numbers = #tpu.dot_dimension_numbers<[1], [0], [0], [1], [0, 0, 1, 1], [], []>} : vector<8x4xbf16>, vector<4x256xbf16>, vector<8x256xf32> -> vector<8x256xf32>
    %58 = arith.addf %48, %57 : vector<8x256xf32>
    %59 = vector.extract_strided_slice %3 {offsets = [0, 15], sizes = [4, 241], strides = [1, 1]} : vector<4x256xbf16> to vector<4x241xbf16>
    %60 = vector.extract_strided_slice %3 {offsets = [0, 0], sizes = [4, 15], strides = [1, 1]} : vector<4x256xbf16> to vector<4x15xbf16>
    %61 = tpu.concatenate %59, %60 in 1 : vector<4x241xbf16>, vector<4x15xbf16> -> vector<4x256xbf16>
    %62 = vector.extract_strided_slice %0 {offsets = [6, 0], sizes = [1, 256], strides = [1, 1]} : vector<9x256xbf16> to vector<1x256xbf16>
    %63 = vector.broadcast %62 : vector<1x256xbf16> to vector<4x256xbf16>
    %64 = arith.mulf %61, %63 : vector<4x256xbf16>
    %c6 = arith.constant 6 : index
    %c0_23 = arith.constant 0 : index
    %c0_24 = arith.constant 0 : index
    %65 = vector.load %arg3[%c6, %c0_23, %c0_24] : memref<9x8x4xbf16, #tpu.memory_space<vmem>>, vector<1x8x4xbf16>
    %66 = vector.shape_cast %65 : vector<1x8x4xbf16> to vector<8x4xbf16>
    %cst_25 = arith.constant dense<0.000000e+00> : vector<8x256xf32>
    %67 = tpu.matmul %66, %64, %cst_25 {dimension_numbers = #tpu.dot_dimension_numbers<[1], [0], [0], [1], [0, 0, 1, 1], [], []>} : vector<8x4xbf16>, vector<4x256xbf16>, vector<8x256xf32> -> vector<8x256xf32>
    %68 = arith.addf %58, %67 : vector<8x256xf32>
    %69 = vector.extract_strided_slice %3 {offsets = [0, 16], sizes = [4, 240], strides = [1, 1]} : vector<4x256xbf16> to vector<4x240xbf16>
    %70 = vector.extract_strided_slice %3 {offsets = [0, 0], sizes = [4, 16], strides = [1, 1]} : vector<4x256xbf16> to vector<4x16xbf16>
    %71 = tpu.concatenate %69, %70 in 1 : vector<4x240xbf16>, vector<4x16xbf16> -> vector<4x256xbf16>
    %72 = vector.extract_strided_slice %0 {offsets = [7, 0], sizes = [1, 256], strides = [1, 1]} : vector<9x256xbf16> to vector<1x256xbf16>
    %73 = vector.broadcast %72 : vector<1x256xbf16> to vector<4x256xbf16>
    %74 = arith.mulf %71, %73 : vector<4x256xbf16>
    %c7 = arith.constant 7 : index
    %c0_26 = arith.constant 0 : index
    %c0_27 = arith.constant 0 : index
    %75 = vector.load %arg3[%c7, %c0_26, %c0_27] : memref<9x8x4xbf16, #tpu.memory_space<vmem>>, vector<1x8x4xbf16>
    %76 = vector.shape_cast %75 : vector<1x8x4xbf16> to vector<8x4xbf16>
    %cst_28 = arith.constant dense<0.000000e+00> : vector<8x256xf32>
    %77 = tpu.matmul %76, %74, %cst_28 {dimension_numbers = #tpu.dot_dimension_numbers<[1], [0], [0], [1], [0, 0, 1, 1], [], []>} : vector<8x4xbf16>, vector<4x256xbf16>, vector<8x256xf32> -> vector<8x256xf32>
    %78 = arith.addf %68, %77 : vector<8x256xf32>
    %79 = vector.extract_strided_slice %3 {offsets = [0, 17], sizes = [4, 239], strides = [1, 1]} : vector<4x256xbf16> to vector<4x239xbf16>
    %80 = vector.extract_strided_slice %3 {offsets = [0, 0], sizes = [4, 17], strides = [1, 1]} : vector<4x256xbf16> to vector<4x17xbf16>
    %81 = tpu.concatenate %79, %80 in 1 : vector<4x239xbf16>, vector<4x17xbf16> -> vector<4x256xbf16>
    %82 = vector.extract_strided_slice %0 {offsets = [8, 0], sizes = [1, 256], strides = [1, 1]} : vector<9x256xbf16> to vector<1x256xbf16>
    %83 = vector.broadcast %82 : vector<1x256xbf16> to vector<4x256xbf16>
    %84 = arith.mulf %81, %83 : vector<4x256xbf16>
    %c8 = arith.constant 8 : index
    %c0_29 = arith.constant 0 : index
    %c0_30 = arith.constant 0 : index
    %85 = vector.load %arg3[%c8, %c0_29, %c0_30] : memref<9x8x4xbf16, #tpu.memory_space<vmem>>, vector<1x8x4xbf16>
    %86 = vector.shape_cast %85 : vector<1x8x4xbf16> to vector<8x4xbf16>
    %cst_31 = arith.constant dense<0.000000e+00> : vector<8x256xf32>
    %87 = tpu.matmul %86, %84, %cst_31 {dimension_numbers = #tpu.dot_dimension_numbers<[1], [0], [0], [1], [0, 0, 1, 1], [], []>} : vector<8x4xbf16>, vector<4x256xbf16>, vector<8x256xf32> -> vector<8x256xf32>
    %88 = arith.addf %78, %87 : vector<8x256xf32>
    %c0_32 = arith.constant 0 : index
    %c0_33 = arith.constant 0 : index
    %89 = vector.load %arg4[%c0_32, %c0_33] : memref<8x1xf32, #tpu.memory_space<vmem>>, vector<8x1xf32>
    %90 = vector.broadcast %89 : vector<8x1xf32> to vector<8x256xf32>
    %91 = arith.addf %88, %90 : vector<8x256xf32>
    %cst_34 = arith.constant 0.000000e+00 : f32
    %92 = vector.broadcast %cst_34 : f32 to vector<8x256xf32>
    %93 = arith.cmpf ogt, %91, %92 : vector<8x256xf32>
    %cst_35 = arith.constant 1.000000e-01 : f32
    %94 = vector.broadcast %cst_35 : f32 to vector<8x256xf32>
    %95 = arith.mulf %91, %94 : vector<8x256xf32>
    %96 = arith.select %93, %91, %95 : vector<8x256xi1>, vector<8x256xf32>
    %97 = arith.truncf %96 : vector<8x256xf32> to vector<8x256xbf16>
    %cst_36 = arith.constant 0.000000e+00 : f32
    %98 = vector.broadcast %cst_36 : f32 to vector<8x256xf32>
    %99 = vector.extract_strided_slice %97 {offsets = [0, 239], sizes = [8, 17], strides = [1, 1]} : vector<8x256xbf16> to vector<8x17xbf16>
    %100 = vector.extract_strided_slice %97 {offsets = [0, 0], sizes = [8, 239], strides = [1, 1]} : vector<8x256xbf16> to vector<8x239xbf16>
    %101 = tpu.concatenate %99, %100 in 1 : vector<8x17xbf16>, vector<8x239xbf16> -> vector<8x256xbf16>
    %102 = vector.extract_strided_slice %0 {offsets = [0, 0], sizes = [1, 256], strides = [1, 1]} : vector<9x256xbf16> to vector<1x256xbf16>
    %103 = vector.broadcast %102 : vector<1x256xbf16> to vector<8x256xbf16>
    %104 = arith.mulf %101, %103 : vector<8x256xbf16>
    %c0_37 = arith.constant 0 : index
    %c0_38 = arith.constant 0 : index
    %c0_39 = arith.constant 0 : index
    %105 = vector.load %arg5[%c0_37, %c0_38, %c0_39] : memref<9x8x8xbf16, #tpu.memory_space<vmem>>, vector<1x8x8xbf16>
    %106 = vector.shape_cast %105 : vector<1x8x8xbf16> to vector<8x8xbf16>
    %cst_40 = arith.constant dense<0.000000e+00> : vector<8x256xf32>
    %107 = tpu.matmul %106, %104, %cst_40 {dimension_numbers = #tpu.dot_dimension_numbers<[1], [0], [0], [1], [0, 0, 1, 1], [], []>} : vector<8x8xbf16>, vector<8x256xbf16>, vector<8x256xf32> -> vector<8x256xf32>
    %108 = arith.addf %98, %107 : vector<8x256xf32>
    %109 = vector.extract_strided_slice %97 {offsets = [0, 240], sizes = [8, 16], strides = [1, 1]} : vector<8x256xbf16> to vector<8x16xbf16>
    %110 = vector.extract_strided_slice %97 {offsets = [0, 0], sizes = [8, 240], strides = [1, 1]} : vector<8x256xbf16> to vector<8x240xbf16>
    %111 = tpu.concatenate %109, %110 in 1 : vector<8x16xbf16>, vector<8x240xbf16> -> vector<8x256xbf16>
    %112 = vector.extract_strided_slice %0 {offsets = [1, 0], sizes = [1, 256], strides = [1, 1]} : vector<9x256xbf16> to vector<1x256xbf16>
    %113 = vector.broadcast %112 : vector<1x256xbf16> to vector<8x256xbf16>
    %114 = arith.mulf %111, %113 : vector<8x256xbf16>
    %c1_41 = arith.constant 1 : index
    %c0_42 = arith.constant 0 : index
    %c0_43 = arith.constant 0 : index
    %115 = vector.load %arg5[%c1_41, %c0_42, %c0_43] : memref<9x8x8xbf16, #tpu.memory_space<vmem>>, vector<1x8x8xbf16>
    %116 = vector.shape_cast %115 : vector<1x8x8xbf16> to vector<8x8xbf16>
    %cst_44 = arith.constant dense<0.000000e+00> : vector<8x256xf32>
    %117 = tpu.matmul %116, %114, %cst_44 {dimension_numbers = #tpu.dot_dimension_numbers<[1], [0], [0], [1], [0, 0, 1, 1], [], []>} : vector<8x8xbf16>, vector<8x256xbf16>, vector<8x256xf32> -> vector<8x256xf32>
    %118 = arith.addf %108, %117 : vector<8x256xf32>
    %119 = vector.extract_strided_slice %97 {offsets = [0, 241], sizes = [8, 15], strides = [1, 1]} : vector<8x256xbf16> to vector<8x15xbf16>
    %120 = vector.extract_strided_slice %97 {offsets = [0, 0], sizes = [8, 241], strides = [1, 1]} : vector<8x256xbf16> to vector<8x241xbf16>
    %121 = tpu.concatenate %119, %120 in 1 : vector<8x15xbf16>, vector<8x241xbf16> -> vector<8x256xbf16>
    %122 = vector.extract_strided_slice %0 {offsets = [2, 0], sizes = [1, 256], strides = [1, 1]} : vector<9x256xbf16> to vector<1x256xbf16>
    %123 = vector.broadcast %122 : vector<1x256xbf16> to vector<8x256xbf16>
    %124 = arith.mulf %121, %123 : vector<8x256xbf16>
    %c2_45 = arith.constant 2 : index
    %c0_46 = arith.constant 0 : index
    %c0_47 = arith.constant 0 : index
    %125 = vector.load %arg5[%c2_45, %c0_46, %c0_47] : memref<9x8x8xbf16, #tpu.memory_space<vmem>>, vector<1x8x8xbf16>
    %126 = vector.shape_cast %125 : vector<1x8x8xbf16> to vector<8x8xbf16>
    %cst_48 = arith.constant dense<0.000000e+00> : vector<8x256xf32>
    %127 = tpu.matmul %126, %124, %cst_48 {dimension_numbers = #tpu.dot_dimension_numbers<[1], [0], [0], [1], [0, 0, 1, 1], [], []>} : vector<8x8xbf16>, vector<8x256xbf16>, vector<8x256xf32> -> vector<8x256xf32>
    %128 = arith.addf %118, %127 : vector<8x256xf32>
    %129 = vector.extract_strided_slice %97 {offsets = [0, 255], sizes = [8, 1], strides = [1, 1]} : vector<8x256xbf16> to vector<8x1xbf16>
    %130 = vector.extract_strided_slice %97 {offsets = [0, 0], sizes = [8, 255], strides = [1, 1]} : vector<8x256xbf16> to vector<8x255xbf16>
    %131 = tpu.concatenate %129, %130 in 1 : vector<8x1xbf16>, vector<8x255xbf16> -> vector<8x256xbf16>
    %132 = vector.extract_strided_slice %0 {offsets = [3, 0], sizes = [1, 256], strides = [1, 1]} : vector<9x256xbf16> to vector<1x256xbf16>
    %133 = vector.broadcast %132 : vector<1x256xbf16> to vector<8x256xbf16>
    %134 = arith.mulf %131, %133 : vector<8x256xbf16>
    %c3_49 = arith.constant 3 : index
    %c0_50 = arith.constant 0 : index
    %c0_51 = arith.constant 0 : index
    %135 = vector.load %arg5[%c3_49, %c0_50, %c0_51] : memref<9x8x8xbf16, #tpu.memory_space<vmem>>, vector<1x8x8xbf16>
    %136 = vector.shape_cast %135 : vector<1x8x8xbf16> to vector<8x8xbf16>
    %cst_52 = arith.constant dense<0.000000e+00> : vector<8x256xf32>
    %137 = tpu.matmul %136, %134, %cst_52 {dimension_numbers = #tpu.dot_dimension_numbers<[1], [0], [0], [1], [0, 0, 1, 1], [], []>} : vector<8x8xbf16>, vector<8x256xbf16>, vector<8x256xf32> -> vector<8x256xf32>
    %138 = arith.addf %128, %137 : vector<8x256xf32>
    %c4_53 = arith.constant 4 : index
    %c0_54 = arith.constant 0 : index
    %c0_55 = arith.constant 0 : index
    %139 = vector.load %arg5[%c4_53, %c0_54, %c0_55] : memref<9x8x8xbf16, #tpu.memory_space<vmem>>, vector<1x8x8xbf16>
    %140 = vector.shape_cast %139 : vector<1x8x8xbf16> to vector<8x8xbf16>
    %cst_56 = arith.constant dense<0.000000e+00> : vector<8x256xf32>
    %141 = tpu.matmul %140, %97, %cst_56 {dimension_numbers = #tpu.dot_dimension_numbers<[1], [0], [0], [1], [0, 0, 1, 1], [], []>} : vector<8x8xbf16>, vector<8x256xbf16>, vector<8x256xf32> -> vector<8x256xf32>
    %142 = arith.addf %138, %141 : vector<8x256xf32>
    %143 = vector.extract_strided_slice %97 {offsets = [0, 1], sizes = [8, 255], strides = [1, 1]} : vector<8x256xbf16> to vector<8x255xbf16>
    %144 = vector.extract_strided_slice %97 {offsets = [0, 0], sizes = [8, 1], strides = [1, 1]} : vector<8x256xbf16> to vector<8x1xbf16>
    %145 = tpu.concatenate %143, %144 in 1 : vector<8x255xbf16>, vector<8x1xbf16> -> vector<8x256xbf16>
    %146 = vector.extract_strided_slice %0 {offsets = [5, 0], sizes = [1, 256], strides = [1, 1]} : vector<9x256xbf16> to vector<1x256xbf16>
    %147 = vector.broadcast %146 : vector<1x256xbf16> to vector<8x256xbf16>
    %148 = arith.mulf %145, %147 : vector<8x256xbf16>
    %c5_57 = arith.constant 5 : index
    %c0_58 = arith.constant 0 : index
    %c0_59 = arith.constant 0 : index
    %149 = vector.load %arg5[%c5_57, %c0_58, %c0_59] : memref<9x8x8xbf16, #tpu.memory_space<vmem>>, vector<1x8x8xbf16>
    %150 = vector.shape_cast %149 : vector<1x8x8xbf16> to vector<8x8xbf16>
    %cst_60 = arith.constant dense<0.000000e+00> : vector<8x256xf32>
    %151 = tpu.matmul %150, %148, %cst_60 {dimension_numbers = #tpu.dot_dimension_numbers<[1], [0], [0], [1], [0, 0, 1, 1], [], []>} : vector<8x8xbf16>, vector<8x256xbf16>, vector<8x256xf32> -> vector<8x256xf32>
    %152 = arith.addf %142, %151 : vector<8x256xf32>
    %153 = vector.extract_strided_slice %97 {offsets = [0, 15], sizes = [8, 241], strides = [1, 1]} : vector<8x256xbf16> to vector<8x241xbf16>
    %154 = vector.extract_strided_slice %97 {offsets = [0, 0], sizes = [8, 15], strides = [1, 1]} : vector<8x256xbf16> to vector<8x15xbf16>
    %155 = tpu.concatenate %153, %154 in 1 : vector<8x241xbf16>, vector<8x15xbf16> -> vector<8x256xbf16>
    %156 = vector.extract_strided_slice %0 {offsets = [6, 0], sizes = [1, 256], strides = [1, 1]} : vector<9x256xbf16> to vector<1x256xbf16>
    %157 = vector.broadcast %156 : vector<1x256xbf16> to vector<8x256xbf16>
    %158 = arith.mulf %155, %157 : vector<8x256xbf16>
    %c6_61 = arith.constant 6 : index
    %c0_62 = arith.constant 0 : index
    %c0_63 = arith.constant 0 : index
    %159 = vector.load %arg5[%c6_61, %c0_62, %c0_63] : memref<9x8x8xbf16, #tpu.memory_space<vmem>>, vector<1x8x8xbf16>
    %160 = vector.shape_cast %159 : vector<1x8x8xbf16> to vector<8x8xbf16>
    %cst_64 = arith.constant dense<0.000000e+00> : vector<8x256xf32>
    %161 = tpu.matmul %160, %158, %cst_64 {dimension_numbers = #tpu.dot_dimension_numbers<[1], [0], [0], [1], [0, 0, 1, 1], [], []>} : vector<8x8xbf16>, vector<8x256xbf16>, vector<8x256xf32> -> vector<8x256xf32>
    %162 = arith.addf %152, %161 : vector<8x256xf32>
    %163 = vector.extract_strided_slice %97 {offsets = [0, 16], sizes = [8, 240], strides = [1, 1]} : vector<8x256xbf16> to vector<8x240xbf16>
    %164 = vector.extract_strided_slice %97 {offsets = [0, 0], sizes = [8, 16], strides = [1, 1]} : vector<8x256xbf16> to vector<8x16xbf16>
    %165 = tpu.concatenate %163, %164 in 1 : vector<8x240xbf16>, vector<8x16xbf16> -> vector<8x256xbf16>
    %166 = vector.extract_strided_slice %0 {offsets = [7, 0], sizes = [1, 256], strides = [1, 1]} : vector<9x256xbf16> to vector<1x256xbf16>
    %167 = vector.broadcast %166 : vector<1x256xbf16> to vector<8x256xbf16>
    %168 = arith.mulf %165, %167 : vector<8x256xbf16>
    %c7_65 = arith.constant 7 : index
    %c0_66 = arith.constant 0 : index
    %c0_67 = arith.constant 0 : index
    %169 = vector.load %arg5[%c7_65, %c0_66, %c0_67] : memref<9x8x8xbf16, #tpu.memory_space<vmem>>, vector<1x8x8xbf16>
    %170 = vector.shape_cast %169 : vector<1x8x8xbf16> to vector<8x8xbf16>
    %cst_68 = arith.constant dense<0.000000e+00> : vector<8x256xf32>
    %171 = tpu.matmul %170, %168, %cst_68 {dimension_numbers = #tpu.dot_dimension_numbers<[1], [0], [0], [1], [0, 0, 1, 1], [], []>} : vector<8x8xbf16>, vector<8x256xbf16>, vector<8x256xf32> -> vector<8x256xf32>
    %172 = arith.addf %162, %171 : vector<8x256xf32>
    %173 = vector.extract_strided_slice %97 {offsets = [0, 17], sizes = [8, 239], strides = [1, 1]} : vector<8x256xbf16> to vector<8x239xbf16>
    %174 = vector.extract_strided_slice %97 {offsets = [0, 0], sizes = [8, 17], strides = [1, 1]} : vector<8x256xbf16> to vector<8x17xbf16>
    %175 = tpu.concatenate %173, %174 in 1 : vector<8x239xbf16>, vector<8x17xbf16> -> vector<8x256xbf16>
    %176 = vector.extract_strided_slice %0 {offsets = [8, 0], sizes = [1, 256], strides = [1, 1]} : vector<9x256xbf16> to vector<1x256xbf16>
    %177 = vector.broadcast %176 : vector<1x256xbf16> to vector<8x256xbf16>
    %178 = arith.mulf %175, %177 : vector<8x256xbf16>
    %c8_69 = arith.constant 8 : index
    %c0_70 = arith.constant 0 : index
    %c0_71 = arith.constant 0 : index
    %179 = vector.load %arg5[%c8_69, %c0_70, %c0_71] : memref<9x8x8xbf16, #tpu.memory_space<vmem>>, vector<1x8x8xbf16>
    %180 = vector.shape_cast %179 : vector<1x8x8xbf16> to vector<8x8xbf16>
    %cst_72 = arith.constant dense<0.000000e+00> : vector<8x256xf32>
    %181 = tpu.matmul %180, %178, %cst_72 {dimension_numbers = #tpu.dot_dimension_numbers<[1], [0], [0], [1], [0, 0, 1, 1], [], []>} : vector<8x8xbf16>, vector<8x256xbf16>, vector<8x256xf32> -> vector<8x256xf32>
    %182 = arith.addf %172, %181 : vector<8x256xf32>
    %c0_73 = arith.constant 0 : index
    %c0_74 = arith.constant 0 : index
    %183 = vector.load %arg6[%c0_73, %c0_74] : memref<8x1xf32, #tpu.memory_space<vmem>>, vector<8x1xf32>
    %184 = vector.broadcast %183 : vector<8x1xf32> to vector<8x256xf32>
    %185 = arith.addf %182, %184 : vector<8x256xf32>
    %c0_75 = arith.constant 0 : index
    %c0_76 = arith.constant 0 : index
    %186 = vector.load %arg7[%c0_75, %c0_76] : memref<8x4xbf16, #tpu.memory_space<vmem>>, vector<8x4xbf16>
    %cst_77 = arith.constant dense<0.000000e+00> : vector<8x256xf32>
    %187 = tpu.matmul %186, %3, %cst_77 {dimension_numbers = #tpu.dot_dimension_numbers<[1], [0], [0], [1], [0, 0, 1, 1], [], []>} : vector<8x4xbf16>, vector<4x256xbf16>, vector<8x256xf32> -> vector<8x256xf32>
    %c0_78 = arith.constant 0 : index
    %c0_79 = arith.constant 0 : index
    %188 = vector.load %arg8[%c0_78, %c0_79] : memref<8x1xf32, #tpu.memory_space<vmem>>, vector<8x1xf32>
    %189 = vector.broadcast %188 : vector<8x1xf32> to vector<8x256xf32>
    %190 = arith.addf %187, %189 : vector<8x256xf32>
    %191 = arith.addf %185, %190 : vector<8x256xf32>
    %cst_80 = arith.constant 0.000000e+00 : f32
    %192 = vector.broadcast %cst_80 : f32 to vector<8x256xf32>
    %193 = arith.cmpf ogt, %191, %192 : vector<8x256xf32>
    %cst_81 = arith.constant 1.000000e-01 : f32
    %194 = vector.broadcast %cst_81 : f32 to vector<8x256xf32>
    %195 = arith.mulf %191, %194 : vector<8x256xf32>
    %196 = arith.select %193, %191, %195 : vector<8x256xi1>, vector<8x256xf32>
    %c0_82 = arith.constant 0 : index
    %c0_83 = arith.constant 0 : index
    %c0_84 = arith.constant 0 : index
    %197 = vector.load %arg9[%c0_82, %c0_83, %c0_84] : memref<1x8x256xf32, #tpu.memory_space<vmem>>, vector<1x8x256xf32>
    %198 = vector.shape_cast %197 : vector<1x8x256xf32> to vector<8x256xf32>
    %199 = vector.shape_cast %196 : vector<8x256xf32> to vector<1x8x256xf32>
    tpu.vector_store %arg9[%c0_82, %c0_83, %c0_84], %199 {strides = array<i32>} : memref<1x8x256xf32, #tpu.memory_space<vmem>>, vector<1x8x256xf32>,
    return
  }
  func.func @transform_0(%arg0: i32) -> (i32, i32, i32) {
    %c0_i32 = arith.constant 0 : i32
    %c0_i32_0 = arith.constant 0 : i32
    %c0_i32_1 = arith.constant 0 : i32
    return %arg0, %c0_i32, %c0_i32_0 : i32, i32, i32
  }
  func.func @transform_1(%arg0: i32) -> (i32, i32) {
    %c0_i32 = arith.constant 0 : i32
    %c0_i32_0 = arith.constant 0 : i32
    %c0_i32_1 = arith.constant 0 : i32
    return %c0_i32, %c0_i32_0 : i32, i32
  }
  func.func @transform_2(%arg0: i32) -> (i32, i32, i32) {
    %c0_i32 = arith.constant 0 : i32
    %c0_i32_0 = arith.constant 0 : i32
    %c0_i32_1 = arith.constant 0 : i32
    %c0_i32_2 = arith.constant 0 : i32
    return %c0_i32, %c0_i32_0, %c0_i32_1 : i32, i32, i32
  }
  func.func @transform_3(%arg0: i32) -> (i32, i32) {
    %c0_i32 = arith.constant 0 : i32
    %c0_i32_0 = arith.constant 0 : i32
    %c0_i32_1 = arith.constant 0 : i32
    return %c0_i32, %c0_i32_0 : i32, i32
  }
  func.func @transform_4(%arg0: i32) -> (i32, i32, i32) {
    %c0_i32 = arith.constant 0 : i32
    %c0_i32_0 = arith.constant 0 : i32
    %c0_i32_1 = arith.constant 0 : i32
    %c0_i32_2 = arith.constant 0 : i32
    return %c0_i32, %c0_i32_0, %c0_i32_1 : i32, i32, i32
  }
  func.func @transform_5(%arg0: i32) -> (i32, i32) {
    %c0_i32 = arith.constant 0 : i32
    %c0_i32_0 = arith.constant 0 : i32
    %c0_i32_1 = arith.constant 0 : i32
    return %c0_i32, %c0_i32_0 : i32, i32
  }
  func.func @transform_6(%arg0: i32) -> (i32, i32) {
    %c0_i32 = arith.constant 0 : i32
    %c0_i32_0 = arith.constant 0 : i32
    %c0_i32_1 = arith.constant 0 : i32
    return %c0_i32, %c0_i32_0 : i32, i32
  }
  func.func @transform_7(%arg0: i32) -> (i32, i32) {
    %c0_i32 = arith.constant 0 : i32
    %c0_i32_0 = arith.constant 0 : i32
    %c0_i32_1 = arith.constant 0 : i32
    return %c0_i32, %c0_i32_0 : i32, i32
  }
  func.func @transform_8(%arg0: i32) -> (i32, i32, i32) {
    %c0_i32 = arith.constant 0 : i32
    %c0_i32_0 = arith.constant 0 : i32
    %c0_i32_1 = arith.constant 0 : i32
    return %arg0, %c0_i32, %c0_i32_0 : i32, i32, i32
  }
}

</mosaic_0001>

<llo_original>
// kernel: tpu_custom_call.1
$region0: #{tpu_custom_call.1}
  #allocation0 [shape = 'u32[]', space=smem, size = 0x4, offset = 0x4, fixed_abs, tag = 'smem constant byte address 0x4 - core index']
  #allocation1 [shape = 'u32[72,128]{1,0:T(1,128)}', space=vmem, size = 0x9000, scoped, tag = 'internal scratch']
  %s0 = inlined_call_operand.vmem [shape: f32[2,4,256], index: 0, kind: input, shape index: {}]
  %s1 = inlined_call_operand.vmem [shape: bf16[9,256], index: 1, kind: input, shape index: {}]
  %s2 = inlined_call_operand.vmem [shape: bf16[9,8,4], index: 2, kind: input, shape index: {}]
  %s3 = inlined_call_operand.vmem [shape: f32[8,1], index: 3, kind: input, shape index: {}]
  %s4 = inlined_call_operand.vmem [shape: bf16[9,8,8], index: 4, kind: input, shape index: {}]
  %s5 = inlined_call_operand.vmem [shape: f32[8,1], index: 5, kind: input, shape index: {}]
  %s6 = inlined_call_operand.vmem [shape: bf16[8,4], index: 6, kind: input, shape index: {}]
  %s7 = inlined_call_operand.vmem [shape: f32[8,1], index: 7, kind: input, shape index: {}]
  %s8 = inlined_call_operand.hbm [shape: f32[2,8,256], index: 8, kind: output, shape index: {}]
  %s9 = sld [smem:[#allocation0]]
  $region65: #{tpu_custom_call.1} parent=0
    _
  %s11 = ssub.s32 1, %s9
  %s12 = scalar_select 0, %s11, %s9
  $region1: #{tpu_custom_call.1} parent=0
    #allocation2 [shape = 'u8[16384]{0}', space=vmem, size = 0x4000, scoped, tag = 'output window, operand 0']
    #allocation3 [shape = 's32[2]{0}', space=sflag, size = 0x8, scoped, tag = 'scoped memory for tpu_custom_call.1']
    %13 = vsyncpa [#allocation3], 0
    %s14 = scalar_lea.sflag [#allocation3], 1
    %15 = vsyncpa %s14, 0
    loop: start=0, step=1, limit=4
    $region2: #{tpu_custom_call.1} parent=1 // loop_pre_header
      _
    $region3: #{tpu_custom_call.1} parent=1 // loop_header
      %s17 = sphi 0, %s21
      %p18 = scmp.ge.s32.totalorder %s17, 4
      %s27 = sphi 0, %s29
      %s30 = sphi 0, %s27
      %s31 = sphi 0, %s30
      %s47 = sphi 0, %s31
      %s51 = sphi 0, %s51
      %s53 = sphi 0, %s51
      %s54 = sphi 0, %s53
      %s68 = sphi 0, %s54
      %s72 = sphi 0, %s72
      %s74 = sphi 0, %s72
      %s75 = sphi 0, %s74
      %s89 = sphi 0, %s75
      %s93 = sphi 0, %s93
      %s95 = sphi 0, %s93
      %s96 = sphi 0, %s95
      %s110 = sphi 0, %s96
      %s114 = sphi 0, %s114
      %s116 = sphi 0, %s114
      %s117 = sphi 0, %s116
      %s131 = sphi 0, %s117
      %s135 = sphi 0, %s135
      %s137 = sphi 0, %s135
      %s138 = sphi 0, %s137
      %s152 = sphi 0, %s138
      %s156 = sphi 0, %s156
      %s158 = sphi 0, %s156
      %s159 = sphi 0, %s158
      %s173 = sphi 0, %s159
      %s177 = sphi 0, %s177
      %s179 = sphi 0, %s177
      %s180 = sphi 0, %s179
      %s194 = sphi 0, %s180
      %s200 = sphi 0, %s202
      %s203 = sphi 0, %s200
      %s204 = sphi 0, %s203
      %s220 = sphi 0, %s204
    $region4: #{tpu_custom_call.1} parent=1 // loop_header_branch
      %20 = sbr.rel (%p18) target = $region8
    $region5: #{tpu_custom_call.1} parent=1 // loop_body
      %s22 = ssub.s32 %s17, 1
      %s23 = ssub.s32 %s17, 2
      %s24 = sadd.s32 %s17, 1
      %s25 = ssub.s32 %s17, %s24
      %p26 = scmp.eq.s32.totalorder %s25, 0
      %s28 = sadd.s32 %s27, 1
      %s29 = scalar_select %p26, %s27, %s28
      %p32 = pneg %p26
      %p33 = scmp.eq.s32.totalorder %s17, 1
      %p34 = por %p32, %p33
      %p35 = scmp.ne.s32.totalorder %s27, %s30
      %p36 = scmp.eq.s32.totalorder %s17, 0
      %p37 = por %p35, %p36
      %p38 = scmp.ne.s32.totalorder %s27, %s30
      %p39 = scmp.eq.s32.totalorder %s22, 1
      %p40 = por %p38, %p39
      %p41 = scmp.ne.s32.totalorder %s30, %s31
      %p42 = scmp.eq.s32.totalorder %s22, 0
      %p43 = por %p41, %p42
      %p44 = scmp.ne.s32.totalorder %s30, %s31
      %p45 = scmp.eq.s32.totalorder %s23, 1
      %p46 = por %p44, %p45
      %p48 = scmp.ne.s32.totalorder %s31, %s47
      %p49 = scmp.eq.s32.totalorder %s23, 0
      %p50 = por %p48, %p49
      %s52 = sadd.s32 %s51, 1
      %p55 = scmp.eq.s32.totalorder %s17, 1
      %p56 = scmp.ne.s32.totalorder %s51, %s53
      %p57 = scmp.eq.s32.totalorder %s17, 0
      %p58 = por %p56, %p57
      %p59 = scmp.ne.s32.totalorder %s51, %s53
      %p60 = scmp.eq.s32.totalorder %s22, 1
      %p61 = por %p59, %p60
      %p62 = scmp.ne.s32.totalorder %s53, %s54
      %p63 = scmp.eq.s32.totalorder %s22, 0
      %p64 = por %p62, %p63
      %p65 = scmp.ne.s32.totalorder %s53, %s54
      %p66 = scmp.eq.s32.totalorder %s23, 1
      %p67 = por %p65, %p66
      %p69 = scmp.ne.s32.totalorder %s54, %s68
      %p70 = scmp.eq.s32.totalorder %s23, 0
      %p71 = por %p69, %p70
      %s73 = sadd.s32 %s72, 1
      %p76 = scmp.eq.s32.totalorder %s17, 1
      %p77 = scmp.ne.s32.totalorder %s72, %s74
      %p78 = scmp.eq.s32.totalorder %s17, 0
      %p79 = por %p77, %p78
      %p80 = scmp.ne.s32.totalorder %s72, %s74
      %p81 = scmp.eq.s32.totalorder %s22, 1
      %p82 = por %p80, %p81
      %p83 = scmp.ne.s32.totalorder %s74, %s75
      %p84 = scmp.eq.s32.totalorder %s22, 0
      %p85 = por %p83, %p84
      %p86 = scmp.ne.s32.totalorder %s74, %s75
      %p87 = scmp.eq.s32.totalorder %s23, 1
      %p88 = por %p86, %p87
      %p90 = scmp.ne.s32.totalorder %s75, %s89
      %p91 = scmp.eq.s32.totalorder %s23, 0
      %p92 = por %p90, %p91
      %s94 = sadd.s32 %s93, 1
      %p97 = scmp.eq.s32.totalorder %s17, 1
      %p98 = scmp.ne.s32.totalorder %s93, %s95
      %p99 = scmp.eq.s32.totalorder %s17, 0
      %p100 = por %p98, %p99
      %p101 = scmp.ne.s32.totalorder %s93, %s95
      %p102 = scmp.eq.s32.totalorder %s22, 1
      %p103 = por %p101, %p102
      %p104 = scmp.ne.s32.totalorder %s95, %s96
      %p105 = scmp.eq.s32.totalorder %s22, 0
      %p106 = por %p104, %p105
      %p107 = scmp.ne.s32.totalorder %s95, %s96
      %p108 = scmp.eq.s32.totalorder %s23, 1
      %p109 = por %p107, %p108
      %p111 = scmp.ne.s32.totalorder %s96, %s110
      %p112 = scmp.eq.s32.totalorder %s23, 0
      %p113 = por %p111, %p112
      %s115 = sadd.s32 %s114, 1
      %p118 = scmp.eq.s32.totalorder %s17, 1
      %p119 = scmp.ne.s32.totalorder %s114, %s116
      %p120 = scmp.eq.s32.totalorder %s17, 0
      %p121 = por %p119, %p120
      %p122 = scmp.ne.s32.totalorder %s114, %s116
      %p123 = scmp.eq.s32.totalorder %s22, 1
      %p124 = por %p122, %p123
      %p125 = scmp.ne.s32.totalorder %s116, %s117
      %p126 = scmp.eq.s32.totalorder %s22, 0
      %p127 = por %p125, %p126
      %p128 = scmp.ne.s32.totalorder %s116, %s117
      %p129 = scmp.eq.s32.totalorder %s23, 1
      %p130 = por %p128, %p129
      %p132 = scmp.ne.s32.totalorder %s117, %s131
      %p133 = scmp.eq.s32.totalorder %s23, 0
      %p134 = por %p132, %p133
      %s136 = sadd.s32 %s135, 1
      %p139 = scmp.eq.s32.totalorder %s17, 1
      %p140 = scmp.ne.s32.totalorder %s135, %s137
      %p141 = scmp.eq.s32.totalorder %s17, 0
      %p142 = por %p140, %p141
      %p143 = scmp.ne.s32.totalorder %s135, %s137
      %p144 = scmp.eq.s32.totalorder %s22, 1
      %p145 = por %p143, %p144
      %p146 = scmp.ne.s32.totalorder %s137, %s138
      %p147 = scmp.eq.s32.totalorder %s22, 0
      %p148 = por %p146, %p147
      %p149 = scmp.ne.s32.totalorder %s137, %s138
      %p150 = scmp.eq.s32.totalorder %s23, 1
      %p151 = por %p149, %p150
      %p153 = scmp.ne.s32.totalorder %s138, %s152
      %p154 = scmp.eq.s32.totalorder %s23, 0
      %p155 = por %p153, %p154
      %s157 = sadd.s32 %s156, 1
      %p160 = scmp.eq.s32.totalorder %s17, 1
      %p161 = scmp.ne.s32.totalorder %s156, %s158
      %p162 = scmp.eq.s32.totalorder %s17, 0
      %p163 = por %p161, %p162
      %p164 = scmp.ne.s32.totalorder %s156, %s158
      %p165 = scmp.eq.s32.totalorder %s22, 1
      %p166 = por %p164, %p165
      %p167 = scmp.ne.s32.totalorder %s158, %s159
      %p168 = scmp.eq.s32.totalorder %s22, 0
      %p169 = por %p167, %p168
      %p170 = scmp.ne.s32.totalorder %s158, %s159
      %p171 = scmp.eq.s32.totalorder %s23, 1
      %p172 = por %p170, %p171
      %p174 = scmp.ne.s32.totalorder %s159, %s173
      %p175 = scmp.eq.s32.totalorder %s23, 0
      %p176 = por %p174, %p175
      %s178 = sadd.s32 %s177, 1
      %p181 = scmp.eq.s32.totalorder %s17, 1
      %p182 = scmp.ne.s32.totalorder %s177, %s179
      %p183 = scmp.eq.s32.totalorder %s17, 0
      %p184 = por %p182, %p183
      %p185 = scmp.ne.s32.totalorder %s177, %s179
      %p186 = scmp.eq.s32.totalorder %s22, 1
      %p187 = por %p185, %p186
      %p188 = scmp.ne.s32.totalorder %s179, %s180
      %p189 = scmp.eq.s32.totalorder %s22, 0
      %p190 = por %p188, %p189
      %p191 = scmp.ne.s32.totalorder %s179, %s180
      %p192 = scmp.eq.s32.totalorder %s23, 1
      %p193 = por %p191, %p192
      %p195 = scmp.ne.s32.totalorder %s180, %s194
      %p196 = scmp.eq.s32.totalorder %s23, 0
      %p197 = por %p195, %p196
      %s198 = ssub.s32 %s17, %s24
      %p199 = scmp.eq.s32.totalorder %s198, 0
      %s201 = sadd.s32 %s200, 1
      %s202 = scalar_select %p199, %s200, %s201
      %p205 = pneg %p199
      %p206 = scmp.eq.s32.totalorder %s17, 1
      %p207 = por %p205, %p206
      %p208 = scmp.ne.s32.totalorder %s200, %s203
      %p209 = scmp.eq.s32.totalorder %s17, 0
      %p210 = por %p208, %p209
      %p211 = scmp.ne.s32.totalorder %s200, %s203
      %p212 = scmp.eq.s32.totalorder %s22, 1
      %p213 = por %p211, %p212
      %p214 = scmp.ne.s32.totalorder %s203, %s204
      %p215 = scmp.eq.s32.totalorder %s22, 0
      %p216 = por %p214, %p215
      %p217 = scmp.ne.s32.totalorder %s203, %s204
      %p218 = scmp.eq.s32.totalorder %s23, 1
      %p219 = por %p217, %p218
      %p221 = scmp.ne.s32.totalorder %s204, %s220
      %p222 = scmp.eq.s32.totalorder %s23, 0
      %p223 = por %p221, %p222
      %p224 = scmp.le.s32.totalorder 1, %s17
      %p225 = scmp.lt.s32.totalorder %s17, 3
      %p226 = pnand %p224, %p225
      %p227 = pneg %p226
      // Predicated region
      $region9: #{tpu_custom_call.1} parent=5 // pred_check
        _
      $region10: #{tpu_custom_call.1} parent=5 // pred_check_branch
        %229 = sbr.rel (%p226) target = $region12
      $region11: #{tpu_custom_call.1} parent=5 // pred_region
        %s230 = ssub.s32 %s17, 1
        // Predicated region
        $region13: #{tpu_custom_call.1} parent=11 // pred_check
          %p231 = pneg %p64
        $region14: #{tpu_custom_call.1} parent=11 // pred_check_branch
          %233 = sbr.rel (%p231) target = $region16
        $region15: #{tpu_custom_call.1} parent=11 // pred_region
          _
        $region16: #{tpu_custom_call.1} parent=11 // pred_fallthru
          _
        // Predicated region
        $region17: #{tpu_custom_call.1} parent=11 // pred_check
          %p234 = pneg %p85
        $region18: #{tpu_custom_call.1} parent=11 // pred_check_branch
          %236 = sbr.rel (%p234) target = $region20
        $region19: #{tpu_custom_call.1} parent=11 // pred_region
          _
        $region20: #{tpu_custom_call.1} parent=11 // pred_fallthru
          _
        // Predicated region
        $region21: #{tpu_custom_call.1} parent=11 // pred_check
          %p237 = pneg %p106
        $region22: #{tpu_custom_call.1} parent=11 // pred_check_branch
          %239 = sbr.rel (%p237) target = $region24
        $region23: #{tpu_custom_call.1} parent=11 // pred_region
          _
        $region24: #{tpu_custom_call.1} parent=11 // pred_fallthru
          _
        // Predicated region
        $region25: #{tpu_custom_call.1} parent=11 // pred_check
          %p240 = pneg %p127
        $region26: #{tpu_custom_call.1} parent=11 // pred_check_branch
          %242 = sbr.rel (%p240) target = $region28
        $region27: #{tpu_custom_call.1} parent=11 // pred_region
          _
        $region28: #{tpu_custom_call.1} parent=11 // pred_fallthru
          _
        // Predicated region
        $region29: #{tpu_custom_call.1} parent=11 // pred_check
          %p243 = pneg %p148
        $region30: #{tpu_custom_call.1} parent=11 // pred_check_branch
          %245 = sbr.rel (%p243) target = $region32
        $region31: #{tpu_custom_call.1} parent=11 // pred_region
          _
        $region32: #{tpu_custom_call.1} parent=11 // pred_fallthru
          _
        // Predicated region
        $region33: #{tpu_custom_call.1} parent=11 // pred_check
          %p246 = pneg %p169
        $region34: #{tpu_custom_call.1} parent=11 // pred_check_branch
          %248 = sbr.rel (%p246) target = $region36
        $region35: #{tpu_custom_call.1} parent=11 // pred_region
          _
        $region36: #{tpu_custom_call.1} parent=11 // pred_fallthru
          _
        // Predicated region
        $region37: #{tpu_custom_call.1} parent=11 // pred_check
          %p249 = pneg %p190
        $region38: #{tpu_custom_call.1} parent=11 // pred_check_branch
          %251 = sbr.rel (%p249) target = $region40
        $region39: #{tpu_custom_call.1} parent=11 // pred_region
          _
        $region40: #{tpu_custom_call.1} parent=11 // pred_fallthru
          _
      $region12: #{tpu_custom_call.1} parent=5 // pred_fallthru
        _
      %p252 = scmp.lt.s32.totalorder %s17, 2
      // Predicated region
      $region41: #{tpu_custom_call.1} parent=5 // pred_check
        %p253 = pneg %p252
      $region42: #{tpu_custom_call.1} parent=5 // pred_check_branch
        %255 = sbr.rel (%p253) target = $region44
      $region43: #{tpu_custom_call.1} parent=5 // pred_region
        // Predicated region
        $region45: #{tpu_custom_call.1} parent=43 // pred_check
          %p256 = pneg %p37
        $region46: #{tpu_custom_call.1} parent=43 // pred_check_branch
          %258 = sbr.rel (%p256) target = $region48
        $region47: #{tpu_custom_call.1} parent=43 // pred_region
          %p259 = scmp.lt.s32.totalorder %s17, 1
          %s260 = scalar_select %p259, %s17, 1
          %s261 = smul.addr %s260, 2
          %s262 = smul.addr %s261, 4
          %s263 = scalar_lea.vmem %s0, %s262
        $region48: #{tpu_custom_call.1} parent=43 // pred_fallthru
          _
      $region44: #{tpu_custom_call.1} parent=5 // pred_fallthru
        _
      %p264 = scmp.le.s32.totalorder 1, %s17
      %p265 = scmp.lt.s32.totalorder %s17, 3
      %p266 = pnand %p264, %p265
      %p267 = pneg %p266
      // Predicated region
      $region49: #{tpu_custom_call.1} parent=5 // pred_check
        _
      $region50: #{tpu_custom_call.1} parent=5 // pred_check_branch
        %269 = sbr.rel (%p266) target = $region52
      $region51: #{tpu_custom_call.1} parent=5 // pred_region
        %s270 = ssub.s32 %s17, 1
        %p271 = scmp.lt.s32.totalorder %s22, 1
        %s272 = scalar_select %p271, %s22, 1
        %s273 = smul.addr %s272, 2
        %s274 = smul.addr %s273, 4
        %s275 = scalar_lea.vmem %s0, %s274
        %p276 = pneg %p43
        %p277 = pneg %p40
        %p278 = pneg %p64
        %p279 = pneg %p61
        %p280 = pneg %p85
        %p281 = pneg %p82
        %p282 = pneg %p106
        %p283 = pneg %p103
        %p284 = pneg %p127
        %p285 = pneg %p124
        %p286 = pneg %p148
        %p287 = pneg %p145
        %p288 = pneg %p169
        %p289 = pneg %p166
        %p290 = pneg %p190
        %p291 = pneg %p187
        %p292 = pneg %p216
        %p293 = pneg %p213
        %s294 = sand.u32 %s203, 1
        %s295 = scalar_lea.sflag [#allocation3], %s294
        %s296 = sand.u32 %s203, 1
        %s297 = smul.addr %s296, 16
        %s298 = scalar_lea.vmem [#allocation2], %s297
        %p299 = scmp.lt.s32.totalorder %s22, 1
        %s300 = scalar_select %p299, %s22, 1
        %s301 = smul.addr %s300, 2
        %s302 = smul.addr %s301, 4
        %s303 = scalar_lea.vmem %s0, %s302
        %v305 = vld [vmem:[%s1] sm:$0xff]
        %v306 = vld [vmem:[%s1 + $0x8] sm:$0x11]
        %v307 = vld [vmem:[%s303] sm:$0xff]
        %309 = vst [vmem:[#allocation1] ss:$2 sm:$0xff] %v307
        %v310 = vld.sshfl [vmem:[#allocation1] sm:$0xff pattern:$0x75316420]
        %v311 = vld.sshfl [vmem:[#allocation1 + $0x8] sm:$0xff pattern:$0x75316420]
        %v314 = vpack.c.bf16 %v311, %v310
        %v316 = vunpack.c.h.b16 %v314
        %v317 = vpack.c.b16 %v316, %v316
        %318 = vrot.lane.b32.xlu0 %v317, 17
        %v319 = vpop.permute.xlu0 %318
        %v320 = vunpack.c.l.b16 %v314
        %v321 = vpack.c.b16 %v320, %v320
        %322 = vrot.lane.b32.xlu0 %v321, 17
        %v323 = vpop.permute.xlu0 %322
        %vm324 = vcmask 138240
        %v325 = vsel %vm324, %v323, %v319
        %vm327 = vcmask 138240
        %v330 = vsel %vm327, %v319, %v323
        %v333 = vunpack.c.l.b16 %v305
        %v334 = vunpack.c.h.b16 %v305
        %v335 = vpack.c.b16 %v333, %v333
        %v336 = vpack.c.b16 %v334, %v334
        %v338 = vpack.i.b16 %v335, %v335
        %v340 = vperm.slane %v338, 0
        %v342 = vpack.i.b16 %v336, %v336
        %v344 = vperm.slane %v342, 0
        %v345 = vunpack.c.l.bf16 %v330
        %v346 = vunpack.c.l.bf16 %v325
        %v347 = vunpack.c.l.bf16 %v340
        %v348 = vunpack.c.l.bf16 %v344
        %v349 = vmul.f32 %v345, %v347
        %v350 = vmul.f32 %v346, %v348
        %v351 = vpack.c.bf16 %v349, %v349
        %v352 = vpack.c.bf16 %v350, %v350
        %v353 = vld [vmem:[%s2] sm:$0xf]
        %354 = vrot.lane.b32.xlu0 %v317, 16
        %v355 = vpop.permute.xlu0 %354
        %356 = vrot.lane.b32.xlu0 %v321, 16
        %v357 = vpop.permute.xlu0 %356
        %vm358 = vcmask 130048
        %v359 = vsel %vm358, %v357, %v355
        %vm361 = vcmask 130048
        %v364 = vsel %vm361, %v355, %v357
        %v366 = vshrl.u32 %v335, 16
        %v367 = vpack.i.b16 %v366, %v366
        %v369 = vperm.slane %v367, 0
        %v370 = vshrl.u32 %v336, 16
        %v371 = vpack.i.b16 %v370, %v370
        %v373 = vperm.slane %v371, 0
        %v374 = vunpack.c.l.bf16 %v364
        %v375 = vunpack.c.l.bf16 %v359
        %v376 = vunpack.c.l.bf16 %v369
        %v377 = vunpack.c.l.bf16 %v373
        %v378 = vmul.f32 %v374, %v376
        %v379 = vmul.f32 %v375, %v377
        %v380 = vpack.c.bf16 %v378, %v378
        %v381 = vpack.c.bf16 %v379, %v379
        %s382 = scalar_lea.vmem %s2, 4
        %v383 = vld [vmem:[%s382] sm:$0xf]
        %vm384 = vcmask 31744
        %v386 = vsel %vm384, %v383, 0
        %vm388 = vcmask 1041408
        %v390 = vsel %vm388, %v380, 0
        %v393 = vsel %vm388, %v381, 0
        %395 = vmatpush.bf16.msra.mxu0 0
        %396 = vmatpush.bf16.msra.mxu0 0
        %397 = vmatpush.bf16.msra.mxu0 0
        %398 = vmatpush.bf16.msra.mxu0 0
        %399 = vmatpush.bf16.msra.mxu0 0
        %400 = vmatpush.bf16.msra.mxu0 0
        %401 = vmatpush.bf16.msra.mxu0 0
        %402 = vmatpush.bf16.msra.mxu0 %v390
        %403 = vmatmul.bf16.gmra.mxu0 %v386
        %v404 = vpop.f32.mrf.mxu0
        %v405 = vadd.f32 0.0, %v404
        %v406 = vpop.f32.mrf.mxu0
        %407 = vdwg.mxu0
        %408 = vmatpush.bf16.msra.mxu0 0
        %409 = vmatpush.bf16.msra.mxu0 0
        %410 = vmatpush.bf16.msra.mxu0 0
        %411 = vmatpush.bf16.msra.mxu0 0
        %412 = vmatpush.bf16.msra.mxu0 0
        %413 = vmatpush.bf16.msra.mxu0 0
        %414 = vmatpush.bf16.msra.mxu0 0
        %415 = vmatpush.bf16.msra.mxu0 %v393
        %416 = vmatmul.bf16.gmra.mxu0 %v386
        %v417 = vpop.f32.mrf.mxu0
        %v418 = vadd.f32 0.0, %v417
        %v419 = vpop.f32.mrf.mxu0
        %420 = vdwg.mxu0
        %v422 = vsel %vm384, %v353, 0
        %v425 = vsel %vm388, %v351, 0
        %v428 = vsel %vm388, %v352, 0
        %430 = vmatpush.bf16.msra.mxu0 0
        %431 = vmatpush.bf16.msra.mxu0 0
        %432 = vmatpush.bf16.msra.mxu0 0
        %433 = vmatpush.bf16.msra.mxu0 0
        %434 = vmatpush.bf16.msra.mxu0 0
        %435 = vmatpush.bf16.msra.mxu0 0
        %436 = vmatpush.bf16.msra.mxu0 0
        %437 = vmatpush.bf16.msra.mxu0 %v425
        %438 = vmatmul.bf16.gmra.mxu0 %v422
        %v439 = vpop.f32.mrf.mxu0
        %v440 = vadd.f32 %v405, %v439
        %v441 = vpop.f32.mrf.mxu0
        %442 = vdwg.mxu0
        %443 = vmatpush.bf16.msra.mxu0 0
        %444 = vmatpush.bf16.msra.mxu0 0
        %445 = vmatpush.bf16.msra.mxu0 0
        %446 = vmatpush.bf16.msra.mxu0 0
        %447 = vmatpush.bf16.msra.mxu0 0
        %448 = vmatpush.bf16.msra.mxu0 0
        %449 = vmatpush.bf16.msra.mxu0 0
        %450 = vmatpush.bf16.msra.mxu0 %v428
        %451 = vmatmul.bf16.gmra.mxu0 %v422
        %v452 = vpop.f32.mrf.mxu0
        %v453 = vadd.f32 %v418, %v452
        %v454 = vpop.f32.mrf.mxu0
        %455 = vdwg.mxu0
        %456 = vrot.lane.b32.xlu0 %v317, 15
        %v457 = vpop.permute.xlu0 %456
        %458 = vrot.lane.b32.xlu0 %v321, 15
        %v459 = vpop.permute.xlu0 %458
        %vm460 = vcmask 121856
        %v461 = vsel %vm460, %v459, %v457
        %vm463 = vcmask 121856
        %v466 = vsel %vm463, %v457, %v459
        %v468 = vperm.slane %v338, 1
        %v469 = vperm.slane %v342, 1
        %v470 = vunpack.c.l.bf16 %v466
        %v471 = vunpack.c.l.bf16 %v461
        %v472 = vunpack.c.l.bf16 %v468
        %v473 = vunpack.c.l.bf16 %v469
        %v474 = vmul.f32 %v470, %v472
        %v475 = vmul.f32 %v471, %v473
        %v476 = vpack.c.bf16 %v474, %v474
        %v477 = vpack.c.bf16 %v475, %v475
        %s478 = scalar_lea.vmem %s2, 8
        %v479 = vld [vmem:[%s478] sm:$0xf]
        %v481 = vsel %vm384, %v479, 0
        %v484 = vsel %vm388, %v476, 0
        %v487 = vsel %vm388, %v477, 0
        %489 = vmatpush.bf16.msra.mxu0 0
        %490 = vmatpush.bf16.msra.mxu0 0
        %491 = vmatpush.bf16.msra.mxu0 0
        %492 = vmatpush.bf16.msra.mxu0 0
        %493 = vmatpush.bf16.msra.mxu0 0
        %494 = vmatpush.bf16.msra.mxu0 0
        %495 = vmatpush.bf16.msra.mxu0 0
        %496 = vmatpush.bf16.msra.mxu0 %v484
        %497 = vmatmul.bf16.gmra.mxu0 %v481
        %v498 = vpop.f32.mrf.mxu0
        %v499 = vadd.f32 0.0, %v498
        %v500 = vpop.f32.mrf.mxu0
        %501 = vdwg.mxu0
        %502 = vmatpush.bf16.msra.mxu0 0
        %503 = vmatpush.bf16.msra.mxu0 0
        %504 = vmatpush.bf16.msra.mxu0 0
        %505 = vmatpush.bf16.msra.mxu0 0
        %506 = vmatpush.bf16.msra.mxu0 0
        %507 = vmatpush.bf16.msra.mxu0 0
        %508 = vmatpush.bf16.msra.mxu0 0
        %509 = vmatpush.bf16.msra.mxu0 %v487
        %510 = vmatmul.bf16.gmra.mxu0 %v481
        %v511 = vpop.f32.mrf.mxu0
        %v512 = vadd.f32 0.0, %v511
        %v513 = vpop.f32.mrf.mxu0
        %514 = vdwg.mxu0
        %v515 = vadd.f32 %v440, %v499
        %v516 = vadd.f32 %v453, %v512
        %517 = vrot.lane.b32.xlu0 %v317, 1
        %v518 = vpop.permute.xlu0 %517
        %519 = vrot.lane.b32.xlu0 %v321, 1
        %v520 = vpop.permute.xlu0 %519
        %vm521 = vcmask 7168
        %v522 = vsel %vm521, %v520, %v518
        %vm524 = vcmask 7168
        %v527 = vsel %vm524, %v518, %v520
        %v529 = vperm.slane %v367, 1
        %v530 = vperm.slane %v371, 1
        %v531 = vunpack.c.l.bf16 %v527
        %v532 = vunpack.c.l.bf16 %v522
        %v533 = vunpack.c.l.bf16 %v529
        %v534 = vunpack.c.l.bf16 %v530
        %v535 = vmul.f32 %v531, %v533
        %v536 = vmul.f32 %v532, %v534
        %v537 = vpack.c.bf16 %v535, %v535
        %v538 = vpack.c.bf16 %v536, %v536
        %s539 = scalar_lea.vmem %s2, 12
        %v540 = vld [vmem:[%s539] sm:$0xf]
        %v542 = vsel %vm384, %v540, 0
        %v545 = vsel %vm388, %v537, 0
        %v548 = vsel %vm388, %v538, 0
        %550 = vmatpush.bf16.msra.mxu0 0
        %551 = vmatpush.bf16.msra.mxu0 0
        %552 = vmatpush.bf16.msra.mxu0 0
        %553 = vmatpush.bf16.msra.mxu0 0
        %554 = vmatpush.bf16.msra.mxu0 0
        %555 = vmatpush.bf16.msra.mxu0 0
        %556 = vmatpush.bf16.msra.mxu0 0
        %557 = vmatpush.bf16.msra.mxu0 %v545
        %558 = vmatmul.bf16.gmra.mxu0 %v542
        %v559 = vpop.f32.mrf.mxu0
        %v560 = vadd.f32 0.0, %v559
        %v561 = vpop.f32.mrf.mxu0
        %562 = vdwg.mxu0
        %563 = vmatpush.bf16.msra.mxu0 0
        %564 = vmatpush.bf16.msra.mxu0 0
        %565 = vmatpush.bf16.msra.mxu0 0
        %566 = vmatpush.bf16.msra.mxu0 0
        %567 = vmatpush.bf16.msra.mxu0 0
        %568 = vmatpush.bf16.msra.mxu0 0
        %569 = vmatpush.bf16.msra.mxu0 0
        %570 = vmatpush.bf16.msra.mxu0 %v548
        %571 = vmatmul.bf16.gmra.mxu0 %v542
        %v572 = vpop.f32.mrf.mxu0
        %v573 = vadd.f32 0.0, %v572
        %v574 = vpop.f32.mrf.mxu0
        %575 = vdwg.mxu0
        %v576 = vadd.f32 %v515, %v560
        %v577 = vadd.f32 %v516, %v573
        %s578 = scalar_lea.vmem %s2, 16
        %v579 = vld [vmem:[%s578] sm:$0xf]
        %v581 = vsel %vm384, %v579, 0
        %v584 = vsel %vm388, %v321, 0
        %v587 = vsel %vm388, %v317, 0
        %589 = vmatpush.bf16.msra.mxu0 0
        %590 = vmatpush.bf16.msra.mxu0 0
        %591 = vmatpush.bf16.msra.mxu0 0
        %592 = vmatpush.bf16.msra.mxu0 0
        %593 = vmatpush.bf16.msra.mxu0 0
        %594 = vmatpush.bf16.msra.mxu0 0
        %595 = vmatpush.bf16.msra.mxu0 0
        %596 = vmatpush.bf16.msra.mxu0 %v584
        %597 = vmatmul.bf16.gmra.mxu0 %v581
        %v598 = vpop.f32.mrf.mxu0
        %v599 = vadd.f32 0.0, %v598
        %v600 = vpop.f32.mrf.mxu0
        %601 = vdwg.mxu0
        %602 = vmatpush.bf16.msra.mxu0 0
        %603 = vmatpush.bf16.msra.mxu0 0
        %604 = vmatpush.bf16.msra.mxu0 0
        %605 = vmatpush.bf16.msra.mxu0 0
        %606 = vmatpush.bf16.msra.mxu0 0
        %607 = vmatpush.bf16.msra.mxu0 0
        %608 = vmatpush.bf16.msra.mxu0 0
        %609 = vmatpush.bf16.msra.mxu0 %v587
        %610 = vmatmul.bf16.gmra.mxu0 %v581
        %v611 = vpop.f32.mrf.mxu0
        %v612 = vadd.f32 0.0, %v611
        %v613 = vpop.f32.mrf.mxu0
        %614 = vdwg.mxu0
        %v615 = vadd.f32 %v576, %v599
        %v616 = vadd.f32 %v577, %v612
        %617 = vrot.lane.b32.xlu0 %v321, 127
        %v618 = vpop.permute.xlu0 %617
        %619 = vrot.lane.b32.xlu0 %v317, 127
        %v620 = vpop.permute.xlu0 %619
        %vm621 = vcmask 1039360
        %v622 = vsel %vm621, %v618, %v620
        %vm624 = vcmask 1039360
        %v627 = vsel %vm624, %v620, %v618
        %v629 = vperm.slane %v367, 2
        %v630 = vperm.slane %v371, 2
        %v631 = vunpack.c.l.bf16 %v622
        %v632 = vunpack.c.l.bf16 %v627
        %v633 = vunpack.c.l.bf16 %v629
        %v634 = vunpack.c.l.bf16 %v630
        %v635 = vmul.f32 %v631, %v633
        %v636 = vmul.f32 %v632, %v634
        %v637 = vpack.c.bf16 %v635, %v635
        %v638 = vpack.c.bf16 %v636, %v636
        %s639 = scalar_lea.vmem %s2, 20
        %v640 = vld [vmem:[%s639] sm:$0xf]
        %v642 = vsel %vm384, %v640, 0
        %v645 = vsel %vm388, %v637, 0
        %v648 = vsel %vm388, %v638, 0
        %650 = vmatpush.bf16.msra.mxu0 0
        %651 = vmatpush.bf16.msra.mxu0 0
        %652 = vmatpush.bf16.msra.mxu0 0
        %653 = vmatpush.bf16.msra.mxu0 0
        %654 = vmatpush.bf16.msra.mxu0 0
        %655 = vmatpush.bf16.msra.mxu0 0
        %656 = vmatpush.bf16.msra.mxu0 0
        %657 = vmatpush.bf16.msra.mxu0 %v645
        %658 = vmatmul.bf16.gmra.mxu0 %v642
        %v659 = vpop.f32.mrf.mxu0
        %v660 = vadd.f32 0.0, %v659
        %v661 = vpop.f32.mrf.mxu0
        %662 = vdwg.mxu0
        %663 = vmatpush.bf16.msra.mxu0 0
        %664 = vmatpush.bf16.msra.mxu0 0
        %665 = vmatpush.bf16.msra.mxu0 0
        %666 = vmatpush.bf16.msra.mxu0 0
        %667 = vmatpush.bf16.msra.mxu0 0
        %668 = vmatpush.bf16.msra.mxu0 0
        %669 = vmatpush.bf16.msra.mxu0 0
        %670 = vmatpush.bf16.msra.mxu0 %v648
        %671 = vmatmul.bf16.gmra.mxu0 %v642
        %v672 = vpop.f32.mrf.mxu0
        %v673 = vadd.f32 0.0, %v672
        %v674 = vpop.f32.mrf.mxu0
        %675 = vdwg.mxu0
        %v676 = vadd.f32 %v615, %v660
        %v677 = vadd.f32 %v616, %v673
        %678 = vrot.lane.b32.xlu0 %v321, 113
        %v679 = vpop.permute.xlu0 %678
        %680 = vrot.lane.b32.xlu0 %v317, 113
        %v681 = vpop.permute.xlu0 %680
        %vm682 = vcmask 924672
        %v683 = vsel %vm682, %v679, %v681
        %vm685 = vcmask 924672
        %v688 = vsel %vm685, %v681, %v679
        %v690 = vperm.slane %v338, 3
        %v691 = vperm.slane %v342, 3
        %v692 = vunpack.c.l.bf16 %v683
        %v693 = vunpack.c.l.bf16 %v688
        %v694 = vunpack.c.l.bf16 %v690
        %v695 = vunpack.c.l.bf16 %v691
        %v696 = vmul.f32 %v692, %v694
        %v697 = vmul.f32 %v693, %v695
        %v698 = vpack.c.bf16 %v696, %v696
        %v699 = vpack.c.bf16 %v697, %v697
        %s700 = scalar_lea.vmem %s2, 24
        %v701 = vld [vmem:[%s700] sm:$0xf]
        %v703 = vsel %vm384, %v701, 0
        %v706 = vsel %vm388, %v698, 0
        %v709 = vsel %vm388, %v699, 0
        %711 = vmatpush.bf16.msra.mxu0 0
        %712 = vmatpush.bf16.msra.mxu0 0
        %713 = vmatpush.bf16.msra.mxu0 0
        %714 = vmatpush.bf16.msra.mxu0 0
        %715 = vmatpush.bf16.msra.mxu0 0
        %716 = vmatpush.bf16.msra.mxu0 0
        %717 = vmatpush.bf16.msra.mxu0 0
        %718 = vmatpush.bf16.msra.mxu0 %v706
        %719 = vmatmul.bf16.gmra.mxu0 %v703
        %v720 = vpop.f32.mrf.mxu0
        %v721 = vadd.f32 0.0, %v720
        %v722 = vpop.f32.mrf.mxu0
        %723 = vdwg.mxu0
        %724 = vmatpush.bf16.msra.mxu0 0
        %725 = vmatpush.bf16.msra.mxu0 0
        %726 = vmatpush.bf16.msra.mxu0 0
        %727 = vmatpush.bf16.msra.mxu0 0
        %728 = vmatpush.bf16.msra.mxu0 0
        %729 = vmatpush.bf16.msra.mxu0 0
        %730 = vmatpush.bf16.msra.mxu0 0
        %731 = vmatpush.bf16.msra.mxu0 %v709
        %732 = vmatmul.bf16.gmra.mxu0 %v703
        %v733 = vpop.f32.mrf.mxu0
        %v734 = vadd.f32 0.0, %v733
        %v735 = vpop.f32.mrf.mxu0
        %736 = vdwg.mxu0
        %v737 = vadd.f32 %v676, %v721
        %v738 = vadd.f32 %v677, %v734
        %739 = vrot.lane.b32.xlu0 %v321, 112
        %v740 = vpop.permute.xlu0 %739
        %741 = vrot.lane.b32.xlu0 %v317, 112
        %v742 = vpop.permute.xlu0 %741
        %vm743 = vcmask 916480
        %v744 = vsel %vm743, %v740, %v742
        %vm746 = vcmask 916480
        %v749 = vsel %vm746, %v742, %v740
        %v751 = vperm.slane %v367, 3
        %v752 = vperm.slane %v371, 3
        %v753 = vunpack.c.l.bf16 %v744
        %v754 = vunpack.c.l.bf16 %v749
        %v755 = vunpack.c.l.bf16 %v751
        %v756 = vunpack.c.l.bf16 %v752
        %v757 = vmul.f32 %v753, %v755
        %v758 = vmul.f32 %v754, %v756
        %v759 = vpack.c.bf16 %v757, %v757
        %v760 = vpack.c.bf16 %v758, %v758
        %s761 = scalar_lea.vmem %s2, 28
        %v762 = vld [vmem:[%s761] sm:$0xf]
        %v764 = vsel %vm384, %v762, 0
        %v767 = vsel %vm388, %v759, 0
        %v770 = vsel %vm388, %v760, 0
        %772 = vmatpush.bf16.msra.mxu0 0
        %773 = vmatpush.bf16.msra.mxu0 0
        %774 = vmatpush.bf16.msra.mxu0 0
        %775 = vmatpush.bf16.msra.mxu0 0
        %776 = vmatpush.bf16.msra.mxu0 0
        %777 = vmatpush.bf16.msra.mxu0 0
        %778 = vmatpush.bf16.msra.mxu0 0
        %779 = vmatpush.bf16.msra.mxu0 %v767
        %780 = vmatmul.bf16.gmra.mxu0 %v764
        %v781 = vpop.f32.mrf.mxu0
        %v782 = vadd.f32 0.0, %v781
        %v783 = vpop.f32.mrf.mxu0
        %784 = vdwg.mxu0
        %785 = vmatpush.bf16.msra.mxu0 0
        %786 = vmatpush.bf16.msra.mxu0 0
        %787 = vmatpush.bf16.msra.mxu0 0
        %788 = vmatpush.bf16.msra.mxu0 0
        %789 = vmatpush.bf16.msra.mxu0 0
        %790 = vmatpush.bf16.msra.mxu0 0
        %791 = vmatpush.bf16.msra.mxu0 0
        %792 = vmatpush.bf16.msra.mxu0 %v770
        %793 = vmatmul.bf16.gmra.mxu0 %v764
        %v794 = vpop.f32.mrf.mxu0
        %v795 = vadd.f32 0.0, %v794
        %v796 = vpop.f32.mrf.mxu0
        %797 = vdwg.mxu0
        %v798 = vadd.f32 %v737, %v782
        %v799 = vadd.f32 %v738, %v795
        %800 = vrot.lane.b32.xlu0 %v321, 111
        %v801 = vpop.permute.xlu0 %800
        %802 = vrot.lane.b32.xlu0 %v317, 111
        %v803 = vpop.permute.xlu0 %802
        %vm804 = vcmask 908288
        %v805 = vsel %vm804, %v801, %v803
        %vm807 = vcmask 908288
        %v810 = vsel %vm807, %v803, %v801
        %v813 = vunpack.c.l.b16 %v306
        %v814 = vunpack.c.h.b16 %v306
        %v815 = vpack.c.b16 %v813, %v813
        %v816 = vpack.c.b16 %v814, %v814
        %v818 = vpack.i.b16 %v815, %v815
        %v820 = vperm.slane %v818, 0
        %v822 = vpack.i.b16 %v816, %v816
        %v824 = vperm.slane %v822, 0
        %v825 = vunpack.c.l.bf16 %v805
        %v826 = vunpack.c.l.bf16 %v810
        %v827 = vunpack.c.l.bf16 %v820
        %v828 = vunpack.c.l.bf16 %v824
        %v829 = vmul.f32 %v825, %v827
        %v830 = vmul.f32 %v826, %v828
        %v831 = vpack.c.bf16 %v829, %v829
        %v832 = vpack.c.bf16 %v830, %v830
        %s833 = scalar_lea.vmem %s2, 32
        %v834 = vld [vmem:[%s833] sm:$0xf]
        %v836 = vsel %vm384, %v834, 0
        %v839 = vsel %vm388, %v831, 0
        %v842 = vsel %vm388, %v832, 0
        %844 = vmatpush.bf16.msra.mxu0 0
        %845 = vmatpush.bf16.msra.mxu0 0
        %846 = vmatpush.bf16.msra.mxu0 0
        %847 = vmatpush.bf16.msra.mxu0 0
        %848 = vmatpush.bf16.msra.mxu0 0
        %849 = vmatpush.bf16.msra.mxu0 0
        %850 = vmatpush.bf16.msra.mxu0 0
        %851 = vmatpush.bf16.msra.mxu0 %v839
        %852 = vmatmul.bf16.gmra.mxu0 %v836
        %v853 = vpop.f32.mrf.mxu0
        %v854 = vadd.f32 0.0, %v853
        %v855 = vpop.f32.mrf.mxu0
        %856 = vdwg.mxu0
        %857 = vmatpush.bf16.msra.mxu0 0
        %858 = vmatpush.bf16.msra.mxu0 0
        %859 = vmatpush.bf16.msra.mxu0 0
        %860 = vmatpush.bf16.msra.mxu0 0
        %861 = vmatpush.bf16.msra.mxu0 0
        %862 = vmatpush.bf16.msra.mxu0 0
        %863 = vmatpush.bf16.msra.mxu0 0
        %864 = vmatpush.bf16.msra.mxu0 %v842
        %865 = vmatmul.bf16.gmra.mxu0 %v836
        %v866 = vpop.f32.mrf.mxu0
        %v867 = vadd.f32 0.0, %v866
        %v868 = vpop.f32.mrf.mxu0
        %869 = vdwg.mxu0
        %v870 = vadd.f32 %v798, %v854
        %v871 = vadd.f32 %v799, %v867
        %v872 = vld [vmem:[%s3] sm:$0xff]
        %874 = vset.pattern.permute.xlu0 0
        %875 = vperm.xlu0 %874, %v872
        %v876 = vpop.permute.xlu0 %875
        %v878 = vadd.f32 %v870, %v876
        %v879 = vadd.f32 %v871, %v876
        %vm880 = vcmp.gt.f32.partialorder %v878, 0.0
        %vm881 = vcmp.gt.f32.partialorder %v879, 0.0
        %v882 = vmul.f32 %v878, 0.1
        %v883 = vmul.f32 %v879, 0.1
        %v884 = vsel %vm880, %v878, %v882
        %v885 = vsel %vm881, %v879, %v883
        %v886 = vpack.c.bf16 %v885, %v884
        %v888 = vunpack.c.h.b16 %v886
        %v889 = vpack.c.b16 %v888, %v888
        %890 = vrot.lane.b32.xlu0 %v889, 17
        %v891 = vpop.permute.xlu0 %890
        %v892 = vunpack.c.l.b16 %v886
        %v893 = vpack.c.b16 %v892, %v892
        %894 = vrot.lane.b32.xlu0 %v893, 17
        %v895 = vpop.permute.xlu0 %894
        %v896 = vsel %vm324, %v895, %v891
        %v900 = vsel %vm327, %v891, %v895
        %v902 = vunpack.c.l.bf16 %v900
        %v903 = vunpack.c.l.bf16 %v896
        %v904 = vmul.f32 %v902, %v347
        %v905 = vmul.f32 %v903, %v348
        %v906 = vpack.c.bf16 %v904, %v904
        %v907 = vpack.c.bf16 %v905, %v905
        %v908 = vld [vmem:[%s4] sm:$0xf]
        %909 = vrot.lane.b32.xlu0 %v889, 16
        %v910 = vpop.permute.xlu0 %909
        %911 = vrot.lane.b32.xlu0 %v893, 16
        %v912 = vpop.permute.xlu0 %911
        %v913 = vsel %vm358, %v912, %v910
        %v917 = vsel %vm361, %v910, %v912
        %v919 = vunpack.c.l.bf16 %v917
        %v920 = vunpack.c.l.bf16 %v913
        %v921 = vmul.f32 %v919, %v376
        %v922 = vmul.f32 %v920, %v377
        %v923 = vpack.c.bf16 %v921, %v921
        %v924 = vpack.c.bf16 %v922, %v922
        %s925 = scalar_lea.vmem %s4, 4
        %v926 = vld [vmem:[%s925] sm:$0xf]
        %vm927 = vcmask 64512
        %v929 = vsel %vm927, %v926, 0
        %vm931 = vcmask 1043456
        %v933 = vsel %vm931, %v923, 0
        %v936 = vsel %vm931, %v924, 0
        %938 = vmatpush.bf16.msra.mxu0 0
        %939 = vmatpush.bf16.msra.mxu0 0
        %940 = vmatpush.bf16.msra.mxu0 0
        %941 = vmatpush.bf16.msra.mxu0 0
        %942 = vmatpush.bf16.msra.mxu0 0
        %943 = vmatpush.bf16.msra.mxu0 0
        %944 = vmatpush.bf16.msra.mxu0 0
        %945 = vmatpush.bf16.msra.mxu0 %v933
        %946 = vmatmul.bf16.gmra.mxu0 %v929
        %v947 = vpop.f32.mrf.mxu0
        %v948 = vadd.f32 0.0, %v947
        %v949 = vpop.f32.mrf.mxu0
        %950 = vdwg.mxu0
        %951 = vmatpush.bf16.msra.mxu0 0
        %952 = vmatpush.bf16.msra.mxu0 0
        %953 = vmatpush.bf16.msra.mxu0 0
        %954 = vmatpush.bf16.msra.mxu0 0
        %955 = vmatpush.bf16.msra.mxu0 0
        %956 = vmatpush.bf16.msra.mxu0 0
        %957 = vmatpush.bf16.msra.mxu0 0
        %958 = vmatpush.bf16.msra.mxu0 %v936
        %959 = vmatmul.bf16.gmra.mxu0 %v929
        %v960 = vpop.f32.mrf.mxu0
        %v961 = vadd.f32 0.0, %v960
        %v962 = vpop.f32.mrf.mxu0
        %963 = vdwg.mxu0
        %v965 = vsel %vm927, %v908, 0
        %v968 = vsel %vm931, %v906, 0
        %v971 = vsel %vm931, %v907, 0
        %973 = vmatpush.bf16.msra.mxu0 0
        %974 = vmatpush.bf16.msra.mxu0 0
        %975 = vmatpush.bf16.msra.mxu0 0
        %976 = vmatpush.bf16.msra.mxu0 0
        %977 = vmatpush.bf16.msra.mxu0 0
        %978 = vmatpush.bf16.msra.mxu0 0
        %979 = vmatpush.bf16.msra.mxu0 0
        %980 = vmatpush.bf16.msra.mxu0 %v968
        %981 = vmatmul.bf16.gmra.mxu0 %v965
        %v982 = vpop.f32.mrf.mxu0
        %v983 = vadd.f32 %v948, %v982
        %v984 = vpop.f32.mrf.mxu0
        %985 = vdwg.mxu0
        %986 = vmatpush.bf16.msra.mxu0 0
        %987 = vmatpush.bf16.msra.mxu0 0
        %988 = vmatpush.bf16.msra.mxu0 0
        %989 = vmatpush.bf16.msra.mxu0 0
        %990 = vmatpush.bf16.msra.mxu0 0
        %991 = vmatpush.bf16.msra.mxu0 0
        %992 = vmatpush.bf16.msra.mxu0 0
        %993 = vmatpush.bf16.msra.mxu0 %v971
        %994 = vmatmul.bf16.gmra.mxu0 %v965
        %v995 = vpop.f32.mrf.mxu0
        %v996 = vadd.f32 %v961, %v995
        %v997 = vpop.f32.mrf.mxu0
        %998 = vdwg.mxu0
        %999 = vrot.lane.b32.xlu0 %v889, 15
        %v1000 = vpop.permute.xlu0 %999
        %1001 = vrot.lane.b32.xlu0 %v893, 15
        %v1002 = vpop.permute.xlu0 %1001
        %v1003 = vsel %vm460, %v1002, %v1000
        %v1007 = vsel %vm463, %v1000, %v1002
        %v1009 = vunpack.c.l.bf16 %v1007
        %v1010 = vunpack.c.l.bf16 %v1003
        %v1011 = vmul.f32 %v1009, %v472
        %v1012 = vmul.f32 %v1010, %v473
        %v1013 = vpack.c.bf16 %v1011, %v1011
        %v1014 = vpack.c.bf16 %v1012, %v1012
        %s1015 = scalar_lea.vmem %s4, 8
        %v1016 = vld [vmem:[%s1015] sm:$0xf]
        %v1018 = vsel %vm927, %v1016, 0
        %v1021 = vsel %vm931, %v1013, 0
        %v1024 = vsel %vm931, %v1014, 0
        %1026 = vmatpush.bf16.msra.mxu0 0
        %1027 = vmatpush.bf16.msra.mxu0 0
        %1028 = vmatpush.bf16.msra.mxu0 0
        %1029 = vmatpush.bf16.msra.mxu0 0
        %1030 = vmatpush.bf16.msra.mxu0 0
        %1031 = vmatpush.bf16.msra.mxu0 0
        %1032 = vmatpush.bf16.msra.mxu0 0
        %1033 = vmatpush.bf16.msra.mxu0 %v1021
        %1034 = vmatmul.bf16.gmra.mxu0 %v1018
        %v1035 = vpop.f32.mrf.mxu0
        %v1036 = vadd.f32 0.0, %v1035
        %v1037 = vpop.f32.mrf.mxu0
        %1038 = vdwg.mxu0
        %1039 = vmatpush.bf16.msra.mxu0 0
        %1040 = vmatpush.bf16.msra.mxu0 0
        %1041 = vmatpush.bf16.msra.mxu0 0
        %1042 = vmatpush.bf16.msra.mxu0 0
        %1043 = vmatpush.bf16.msra.mxu0 0
        %1044 = vmatpush.bf16.msra.mxu0 0
        %1045 = vmatpush.bf16.msra.mxu0 0
        %1046 = vmatpush.bf16.msra.mxu0 %v1024
        %1047 = vmatmul.bf16.gmra.mxu0 %v1018
        %v1048 = vpop.f32.mrf.mxu0
        %v1049 = vadd.f32 0.0, %v1048
        %v1050 = vpop.f32.mrf.mxu0
        %1051 = vdwg.mxu0
        %v1052 = vadd.f32 %v983, %v1036
        %v1053 = vadd.f32 %v996, %v1049
        %1054 = vrot.lane.b32.xlu0 %v889, 1
        %v1055 = vpop.permute.xlu0 %1054
        %1056 = vrot.lane.b32.xlu0 %v893, 1
        %v1057 = vpop.permute.xlu0 %1056
        %v1058 = vsel %vm521, %v1057, %v1055
        %v1062 = vsel %vm524, %v1055, %v1057
        %v1064 = vunpack.c.l.bf16 %v1062
        %v1065 = vunpack.c.l.bf16 %v1058
        %v1066 = vmul.f32 %v1064, %v533
        %v1067 = vmul.f32 %v1065, %v534
        %v1068 = vpack.c.bf16 %v1066, %v1066
        %v1069 = vpack.c.bf16 %v1067, %v1067
        %s1070 = scalar_lea.vmem %s4, 12
        %v1071 = vld [vmem:[%s1070] sm:$0xf]
        %v1073 = vsel %vm927, %v1071, 0
        %v1076 = vsel %vm931, %v1068, 0
        %v1079 = vsel %vm931, %v1069, 0
        %1081 = vmatpush.bf16.msra.mxu0 0
        %1082 = vmatpush.bf16.msra.mxu0 0
        %1083 = vmatpush.bf16.msra.mxu0 0
        %1084 = vmatpush.bf16.msra.mxu0 0
        %1085 = vmatpush.bf16.msra.mxu0 0
        %1086 = vmatpush.bf16.msra.mxu0 0
        %1087 = vmatpush.bf16.msra.mxu0 0
        %1088 = vmatpush.bf16.msra.mxu0 %v1076
        %1089 = vmatmul.bf16.gmra.mxu0 %v1073
        %v1090 = vpop.f32.mrf.mxu0
        %v1091 = vadd.f32 0.0, %v1090
        %v1092 = vpop.f32.mrf.mxu0
        %1093 = vdwg.mxu0
        %1094 = vmatpush.bf16.msra.mxu0 0
        %1095 = vmatpush.bf16.msra.mxu0 0
        %1096 = vmatpush.bf16.msra.mxu0 0
        %1097 = vmatpush.bf16.msra.mxu0 0
        %1098 = vmatpush.bf16.msra.mxu0 0
        %1099 = vmatpush.bf16.msra.mxu0 0
        %1100 = vmatpush.bf16.msra.mxu0 0
        %1101 = vmatpush.bf16.msra.mxu0 %v1079
        %1102 = vmatmul.bf16.gmra.mxu0 %v1073
        %v1103 = vpop.f32.mrf.mxu0
        %v1104 = vadd.f32 0.0, %v1103
        %v1105 = vpop.f32.mrf.mxu0
        %1106 = vdwg.mxu0
        %v1107 = vadd.f32 %v1052, %v1091
        %v1108 = vadd.f32 %v1053, %v1104
        %s1109 = scalar_lea.vmem %s4, 16
        %v1110 = vld [vmem:[%s1109] sm:$0xf]
        %v1112 = vsel %vm927, %v1110, 0
        %v1115 = vsel %vm931, %v893, 0
        %v1118 = vsel %vm931, %v889, 0
        %1120 = vmatpush.bf16.msra.mxu0 0
        %1121 = vmatpush.bf16.msra.mxu0 0
        %1122 = vmatpush.bf16.msra.mxu0 0
        %1123 = vmatpush.bf16.msra.mxu0 0
        %1124 = vmatpush.bf16.msra.mxu0 0
        %1125 = vmatpush.bf16.msra.mxu0 0
        %1126 = vmatpush.bf16.msra.mxu0 0
        %1127 = vmatpush.bf16.msra.mxu0 %v1115
        %1128 = vmatmul.bf16.gmra.mxu0 %v1112
        %v1129 = vpop.f32.mrf.mxu0
        %v1130 = vadd.f32 0.0, %v1129
        %v1131 = vpop.f32.mrf.mxu0
        %1132 = vdwg.mxu0
        %1133 = vmatpush.bf16.msra.mxu0 0
        %1134 = vmatpush.bf16.msra.mxu0 0
        %1135 = vmatpush.bf16.msra.mxu0 0
        %1136 = vmatpush.bf16.msra.mxu0 0
        %1137 = vmatpush.bf16.msra.mxu0 0
        %1138 = vmatpush.bf16.msra.mxu0 0
        %1139 = vmatpush.bf16.msra.mxu0 0
        %1140 = vmatpush.bf16.msra.mxu0 %v1118
        %1141 = vmatmul.bf16.gmra.mxu0 %v1112
        %v1142 = vpop.f32.mrf.mxu0
        %v1143 = vadd.f32 0.0, %v1142
        %v1144 = vpop.f32.mrf.mxu0
        %1145 = vdwg.mxu0
        %v1146 = vadd.f32 %v1107, %v1130
        %v1147 = vadd.f32 %v1108, %v1143
        %1148 = vrot.lane.b32.xlu0 %v893, 127
        %v1149 = vpop.permute.xlu0 %1148
        %1150 = vrot.lane.b32.xlu0 %v889, 127
        %v1151 = vpop.permute.xlu0 %1150
        %v1152 = vsel %vm621, %v1149, %v1151
        %v1156 = vsel %vm624, %v1151, %v1149
        %v1158 = vunpack.c.l.bf16 %v1152
        %v1159 = vunpack.c.l.bf16 %v1156
        %v1160 = vmul.f32 %v1158, %v633
        %v1161 = vmul.f32 %v1159, %v634
        %v1162 = vpack.c.bf16 %v1160, %v1160
        %v1163 = vpack.c.bf16 %v1161, %v1161
        %s1164 = scalar_lea.vmem %s4, 20
        %v1165 = vld [vmem:[%s1164] sm:$0xf]
        %v1167 = vsel %vm927, %v1165, 0
        %v1170 = vsel %vm931, %v1162, 0
        %v1173 = vsel %vm931, %v1163, 0
        %1175 = vmatpush.bf16.msra.mxu0 0
        %1176 = vmatpush.bf16.msra.mxu0 0
        %1177 = vmatpush.bf16.msra.mxu0 0
        %1178 = vmatpush.bf16.msra.mxu0 0
        %1179 = vmatpush.bf16.msra.mxu0 0
        %1180 = vmatpush.bf16.msra.mxu0 0
        %1181 = vmatpush.bf16.msra.mxu0 0
        %1182 = vmatpush.bf16.msra.mxu0 %v1170
        %1183 = vmatmul.bf16.gmra.mxu0 %v1167
        %v1184 = vpop.f32.mrf.mxu0
        %v1185 = vadd.f32 0.0, %v1184
        %v1186 = vpop.f32.mrf.mxu0
        %1187 = vdwg.mxu0
        %1188 = vmatpush.bf16.msra.mxu0 0
        %1189 = vmatpush.bf16.msra.mxu0 0
        %1190 = vmatpush.bf16.msra.mxu0 0
        %1191 = vmatpush.bf16.msra.mxu0 0
        %1192 = vmatpush.bf16.msra.mxu0 0
        %1193 = vmatpush.bf16.msra.mxu0 0
        %1194 = vmatpush.bf16.msra.mxu0 0
        %1195 = vmatpush.bf16.msra.mxu0 %v1173
        %1196 = vmatmul.bf16.gmra.mxu0 %v1167
        %v1197 = vpop.f32.mrf.mxu0
        %v1198 = vadd.f32 0.0, %v1197
        %v1199 = vpop.f32.mrf.mxu0
        %1200 = vdwg.mxu0
        %v1201 = vadd.f32 %v1146, %v1185
        %v1202 = vadd.f32 %v1147, %v1198
        %1203 = vrot.lane.b32.xlu0 %v893, 113
        %v1204 = vpop.permute.xlu0 %1203
        %1205 = vrot.lane.b32.xlu0 %v889, 113
        %v1206 = vpop.permute.xlu0 %1205
        %v1207 = vsel %vm682, %v1204, %v1206
        %v1211 = vsel %vm685, %v1206, %v1204
        %v1213 = vunpack.c.l.bf16 %v1207
        %v1214 = vunpack.c.l.bf16 %v1211
        %v1215 = vmul.f32 %v1213, %v694
        %v1216 = vmul.f32 %v1214, %v695
        %v1217 = vpack.c.bf16 %v1215, %v1215
        %v1218 = vpack.c.bf16 %v1216, %v1216
        %s1219 = scalar_lea.vmem %s4, 24
        %v1220 = vld [vmem:[%s1219] sm:$0xf]
        %v1222 = vsel %vm927, %v1220, 0
        %v1225 = vsel %vm931, %v1217, 0
        %v1228 = vsel %vm931, %v1218, 0
        %1230 = vmatpush.bf16.msra.mxu0 0
        %1231 = vmatpush.bf16.msra.mxu0 0
        %1232 = vmatpush.bf16.msra.mxu0 0
        %1233 = vmatpush.bf16.msra.mxu0 0
        %1234 = vmatpush.bf16.msra.mxu0 0
        %1235 = vmatpush.bf16.msra.mxu0 0
        %1236 = vmatpush.bf16.msra.mxu0 0
        %1237 = vmatpush.bf16.msra.mxu0 %v1225
        %1238 = vmatmul.bf16.gmra.mxu0 %v1222
        %v1239 = vpop.f32.mrf.mxu0
        %v1240 = vadd.f32 0.0, %v1239
        %v1241 = vpop.f32.mrf.mxu0
        %1242 = vdwg.mxu0
        %1243 = vmatpush.bf16.msra.mxu0 0
        %1244 = vmatpush.bf16.msra.mxu0 0
        %1245 = vmatpush.bf16.msra.mxu0 0
        %1246 = vmatpush.bf16.msra.mxu0 0
        %1247 = vmatpush.bf16.msra.mxu0 0
        %1248 = vmatpush.bf16.msra.mxu0 0
        %1249 = vmatpush.bf16.msra.mxu0 0
        %1250 = vmatpush.bf16.msra.mxu0 %v1228
        %1251 = vmatmul.bf16.gmra.mxu0 %v1222
        %v1252 = vpop.f32.mrf.mxu0
        %v1253 = vadd.f32 0.0, %v1252
        %v1254 = vpop.f32.mrf.mxu0
        %1255 = vdwg.mxu0
        %v1256 = vadd.f32 %v1201, %v1240
        %v1257 = vadd.f32 %v1202, %v1253
        %1258 = vrot.lane.b32.xlu0 %v893, 112
        %v1259 = vpop.permute.xlu0 %1258
        %1260 = vrot.lane.b32.xlu0 %v889, 112
        %v1261 = vpop.permute.xlu0 %1260
        %v1262 = vsel %vm743, %v1259, %v1261
        %v1266 = vsel %vm746, %v1261, %v1259
        %v1268 = vunpack.c.l.bf16 %v1262
        %v1269 = vunpack.c.l.bf16 %v1266
        %v1270 = vmul.f32 %v1268, %v755
        %v1271 = vmul.f32 %v1269, %v756
        %v1272 = vpack.c.bf16 %v1270, %v1270
        %v1273 = vpack.c.bf16 %v1271, %v1271
        %s1274 = scalar_lea.vmem %s4, 28
        %v1275 = vld [vmem:[%s1274] sm:$0xf]
        %v1277 = vsel %vm927, %v1275, 0
        %v1280 = vsel %vm931, %v1272, 0
        %v1283 = vsel %vm931, %v1273, 0
        %1285 = vmatpush.bf16.msra.mxu0 0
        %1286 = vmatpush.bf16.msra.mxu0 0
        %1287 = vmatpush.bf16.msra.mxu0 0
        %1288 = vmatpush.bf16.msra.mxu0 0
        %1289 = vmatpush.bf16.msra.mxu0 0
        %1290 = vmatpush.bf16.msra.mxu0 0
        %1291 = vmatpush.bf16.msra.mxu0 0
        %1292 = vmatpush.bf16.msra.mxu0 %v1280
        %1293 = vmatmul.bf16.gmra.mxu0 %v1277
        %v1294 = vpop.f32.mrf.mxu0
        %v1295 = vadd.f32 0.0, %v1294
        %v1296 = vpop.f32.mrf.mxu0
        %1297 = vdwg.mxu0
        %1298 = vmatpush.bf16.msra.mxu0 0
        %1299 = vmatpush.bf16.msra.mxu0 0
        %1300 = vmatpush.bf16.msra.mxu0 0
        %1301 = vmatpush.bf16.msra.mxu0 0
        %1302 = vmatpush.bf16.msra.mxu0 0
        %1303 = vmatpush.bf16.msra.mxu0 0
        %1304 = vmatpush.bf16.msra.mxu0 0
        %1305 = vmatpush.bf16.msra.mxu0 %v1283
        %1306 = vmatmul.bf16.gmra.mxu0 %v1277
        %v1307 = vpop.f32.mrf.mxu0
        %v1308 = vadd.f32 0.0, %v1307
        %v1309 = vpop.f32.mrf.mxu0
        %1310 = vdwg.mxu0
        %v1311 = vadd.f32 %v1256, %v1295
        %v1312 = vadd.f32 %v1257, %v1308
        %1313 = vrot.lane.b32.xlu0 %v893, 111
        %v1314 = vpop.permute.xlu0 %1313
        %1315 = vrot.lane.b32.xlu0 %v889, 111
        %v1316 = vpop.permute.xlu0 %1315
        %v1317 = vsel %vm804, %v1314, %v1316
        %v1321 = vsel %vm807, %v1316, %v1314
        %v1323 = vunpack.c.l.bf16 %v1317
        %v1324 = vunpack.c.l.bf16 %v1321
        %v1325 = vmul.f32 %v1323, %v827
        %v1326 = vmul.f32 %v1324, %v828
        %v1327 = vpack.c.bf16 %v1325, %v1325
        %v1328 = vpack.c.bf16 %v1326, %v1326
        %s1329 = scalar_lea.vmem %s4, 32
        %v1330 = vld [vmem:[%s1329] sm:$0xf]
        %v1332 = vsel %vm927, %v1330, 0
        %v1335 = vsel %vm931, %v1327, 0
        %v1338 = vsel %vm931, %v1328, 0
        %1340 = vmatpush.bf16.msra.mxu0 0
        %1341 = vmatpush.bf16.msra.mxu0 0
        %1342 = vmatpush.bf16.msra.mxu0 0
        %1343 = vmatpush.bf16.msra.mxu0 0
        %1344 = vmatpush.bf16.msra.mxu0 0
        %1345 = vmatpush.bf16.msra.mxu0 0
        %1346 = vmatpush.bf16.msra.mxu0 0
        %1347 = vmatpush.bf16.msra.mxu0 %v1335
        %1348 = vmatmul.bf16.gmra.mxu0 %v1332
        %v1349 = vpop.f32.mrf.mxu0
        %v1350 = vadd.f32 0.0, %v1349
        %v1351 = vpop.f32.mrf.mxu0
        %1352 = vdwg.mxu0
        %1353 = vmatpush.bf16.msra.mxu0 0
        %1354 = vmatpush.bf16.msra.mxu0 0
        %1355 = vmatpush.bf16.msra.mxu0 0
        %1356 = vmatpush.bf16.msra.mxu0 0
        %1357 = vmatpush.bf16.msra.mxu0 0
        %1358 = vmatpush.bf16.msra.mxu0 0
        %1359 = vmatpush.bf16.msra.mxu0 0
        %1360 = vmatpush.bf16.msra.mxu0 %v1338
        %1361 = vmatmul.bf16.gmra.mxu0 %v1332
        %v1362 = vpop.f32.mrf.mxu0
        %v1363 = vadd.f32 0.0, %v1362
        %v1364 = vpop.f32.mrf.mxu0
        %1365 = vdwg.mxu0
        %v1366 = vadd.f32 %v1311, %v1350
        %v1367 = vadd.f32 %v1312, %v1363
        %v1368 = vld [vmem:[%s5] sm:$0xff]
        %1370 = vset.pattern.permute.xlu0 0
        %1371 = vperm.xlu0 %1370, %v1368
        %v1372 = vpop.permute.xlu0 %1371
        %v1374 = vadd.f32 %v1366, %v1372
        %v1375 = vadd.f32 %v1367, %v1372
        %v1376 = vld [vmem:[%s6] sm:$0xf]
        %v1377 = vld [vmem:[%s7] sm:$0xff]
        %1379 = vset.pattern.permute.xlu0 0
        %1380 = vperm.xlu0 %1379, %v1377
        %v1381 = vpop.permute.xlu0 %1380
        %v1384 = vsel %vm384, %v1376, 0
        %1386 = vmatpush.bf16.msra.mxu0 0
        %1387 = vmatpush.bf16.msra.mxu0 0
        %1388 = vmatpush.bf16.msra.mxu0 0
        %1389 = vmatpush.bf16.msra.mxu0 0
        %1390 = vmatpush.bf16.msra.mxu0 0
        %1391 = vmatpush.bf16.msra.mxu0 0
        %1392 = vmatpush.bf16.msra.mxu0 0
        %1393 = vmatpush.bf16.msra.mxu0 %v584
        %1394 = vmatmul.bf16.gmra.mxu0 %v1384
        %v1395 = vpop.f32.mrf.mxu0
        %v1396 = vadd.f32 %v1381, %v1395
        %v1397 = vpop.f32.mrf.mxu0
        %1398 = vdwg.mxu0
        %1399 = vmatpush.bf16.msra.mxu0 0
        %1400 = vmatpush.bf16.msra.mxu0 0
        %1401 = vmatpush.bf16.msra.mxu0 0
        %1402 = vmatpush.bf16.msra.mxu0 0
        %1403 = vmatpush.bf16.msra.mxu0 0
        %1404 = vmatpush.bf16.msra.mxu0 0
        %1405 = vmatpush.bf16.msra.mxu0 0
        %1406 = vmatpush.bf16.msra.mxu0 %v587
        %1407 = vmatmul.bf16.gmra.mxu0 %v1384
        %v1408 = vpop.f32.mrf.mxu0
        %v1409 = vadd.f32 %v1381, %v1408
        %v1410 = vpop.f32.mrf.mxu0
        %1411 = vdwg.mxu0
        %v1412 = vadd.f32 %v1374, %v1396
        %v1413 = vadd.f32 %v1375, %v1409
        %vm1414 = vcmp.gt.f32.partialorder %v1412, 0.0
        %vm1415 = vcmp.gt.f32.partialorder %v1413, 0.0
        %v1416 = vmul.f32 %v1412, 0.1
        %v1417 = vmul.f32 %v1413, 0.1
        %v1418 = vsel %vm1414, %v1412, %v1416
        %v1419 = vsel %vm1415, %v1413, %v1417
        %1420 = vst [vmem:[%s298] sm:$0xff] %v1418
        %1421 = vst [vmem:[%s298 + $0x8] sm:$0xff] %v1419
        %s1422 = sand.u32 %s203, 1
        %s1423 = scalar_lea.sflag [#allocation3], %s1422
        %s1424 = sand.u32 %s203, 1
        %s1425 = smul.addr %s1424, 16
        %s1426 = scalar_lea.vmem [#allocation2], %s1425
        // Predicated region
        $region53: #{tpu_custom_call.1} parent=51 // pred_check
          %p1427 = pneg %p213
        $region54: #{tpu_custom_call.1} parent=51 // pred_check_branch
          %1429 = sbr.rel (%p1427) target = $region56
        $region55: #{tpu_custom_call.1} parent=51 // pred_region
          %1431 = vsyncadd %s1423, 0
          %s1432 = smul.addr %s22, 2
          %s1433 = smul.addr %s1432, 8
          %s1434 = scalar_lea.hbm %s8, %s1433
          %s1436 = sshll.u32 %s1426, 4
          %s1437 = int_to_ptr.vmem [resolvable:$true] %s1436
          %s1438 = sshll.u32 %s1434, 4
          %s1439 = int_to_ptr.hbm [resolvable:$true] %s1438
          %1441 = dma.vmem_to_hbm [thread:$0]  %s1437, 256, %s1439, %s1423
        $region56: #{tpu_custom_call.1} parent=51 // pred_fallthru
          _
      $region52: #{tpu_custom_call.1} parent=5 // pred_fallthru
        _
      %p1442 = scmp.le.s32.totalorder 2, %s17
      // Predicated region
      $region57: #{tpu_custom_call.1} parent=5 // pred_check
        %p1443 = pneg %p1442
      $region58: #{tpu_custom_call.1} parent=5 // pred_check_branch
        %1445 = sbr.rel (%p1443) target = $region60
      $region59: #{tpu_custom_call.1} parent=5 // pred_region
        %s1446 = ssub.s32 %s17, 2
        // Predicated region
        $region61: #{tpu_custom_call.1} parent=59 // pred_check
          %p1447 = pneg %p219
        $region62: #{tpu_custom_call.1} parent=59 // pred_check_branch
          %1449 = sbr.rel (%p1447) target = $region64
        $region63: #{tpu_custom_call.1} parent=59 // pred_region
          %s1450 = sand.u32 %s204, 1
          %s1451 = scalar_lea.sflag [#allocation3], %s1450
          %s1452 = sand.u32 %s204, 1
          %s1453 = smul.addr %s1452, 16
          %s1454 = scalar_lea.vmem [#allocation2], %s1453
          %1456 = dma.done %s1451, 256
        $region64: #{tpu_custom_call.1} parent=59 // pred_fallthru
          _
      $region60: #{tpu_custom_call.1} parent=5 // pred_fallthru
        _
    $region6: #{tpu_custom_call.1} parent=1 // loop_footer
      %s21 = sadd.s32 1, %s17
    $region7: #{tpu_custom_call.1} parent=1 // loop_footer_branch
      %16 = sbr.rel target = $region3
    $region8: #{tpu_custom_call.1} parent=1 // loop_exit
      _
    %1457 = vsyncpa [#allocation3], 1
    %s1458 = scalar_lea.sflag [#allocation3], 1
    %1459 = vsyncpa %s1458, 1

</llo_original>
